<compile_context>
chip_gen: v5e
topology: v5e:2x2
jax: 0.10.0
libtpu: 0.0.40
codegen_flags: <defaults>
</compile_context>

<pallas_src>
import functools

import jax
import jax.numpy as jnp
from jax import lax
from jax.experimental import pallas as pl
from jax.experimental.pallas import tpu as pltpu

EXPANSION = 4
BN_EPS = 1e-5


def _bn(h2d, gamma, beta, *, relu):
    """Training-mode BatchNorm over rows (= N*H*W) per channel, biased var."""
    mean = jnp.mean(h2d, axis=0, keepdims=True)
    cent = h2d - mean
    var = jnp.mean(cent * cent, axis=0, keepdims=True)
    y = cent * (gamma * lax.rsqrt(var + BN_EPS)) + beta
    return jnp.maximum(y, 0.0) if relu else y


def _zero_pad_hw(h):
    """Spatial zero padding (pad=1) of an NHWC value, kept in VMEM."""
    N, H, W, C = h.shape
    zr = jnp.zeros((N, 1, W, C), h.dtype)
    h = jnp.concatenate([zr, h, zr], axis=1)          # pad H (leading dim)
    zc = jnp.zeros((N, H + 2, 1, C), h.dtype)
    return jnp.concatenate([zc, h, zc], axis=2)       # pad W (sublane dim)


def _decimate(v, stride):
    """Keep every `stride`-th row/col of an NHWC value (top-left of each cell).

    Reshape + static index only (no strided slices), so it lowers cleanly.
    Zero-pads up to a multiple of `stride`; padded rows/cols are discarded by
    the index-0 pick.
    """
    if stride == 1:
        return v
    N, H, W, C = v.shape
    Ho = (H - 1) // stride + 1
    Wo = (W - 1) // stride + 1
    if Ho * stride != H:
        v = jnp.concatenate(
            [v, jnp.zeros((N, Ho * stride - H, W, C), v.dtype)], axis=1)
    if Wo * stride != W:
        v = jnp.concatenate(
            [v, jnp.zeros((N, Ho * stride, Wo * stride - W, C), v.dtype)],
            axis=2)
    v = v.reshape(N, Ho, stride, Wo * stride, C)[:, :, 0, :, :]
    v = v.reshape(N, Ho, Wo, stride, C)[:, :, :, 0, :]
    return v


def _bottleneck_kernel(N, H, W, Cin, P, stride, has_proj, mxu_dtype, *refs):
    """Whole Bottleneck block fused into one grid-less Pallas kernel."""
    if has_proj:
        (x_ref, w1_ref, g1_ref, b1_ref, w2_ref, g2_ref, b2_ref,
         w3_ref, g3_ref, b3_ref, ws_ref, gs_ref, bs_ref, o_ref) = refs
    else:
        (x_ref, w1_ref, g1_ref, b1_ref, w2_ref, g2_ref, b2_ref,
         w3_ref, g3_ref, b3_ref, o_ref) = refs

    Cout = EXPANSION * P
    Ho = (H - 1) // stride + 1
    Wo = (W - 1) // stride + 1

    def mm(a, b):  # MXU matmul with f32 accumulation
        return jnp.dot(a.astype(mxu_dtype), b.astype(mxu_dtype),
                       preferred_element_type=jnp.float32)

    # ---- stage 1: conv1 (1x1, no bias) -> bn1 -> relu  (one MXU matmul) ----
    x = x_ref[...]
    x2d = x.reshape(N * H * W, Cin)
    h1 = _bn(mm(x2d, w1_ref[...]), g1_ref[...], b1_ref[...], relu=True)

    # ---- conv2 (3x3, padding=1, stride) as im2col + ONE matmul ------------
    # Padding stays in VMEM (no HBM round-trip, no separate XLA pad op).
    h1p = _zero_pad_hw(h1.reshape(N, H, W, P))         # (N, H+2, W+2, P)
    taps = [h1p[:, dy:dy + H, dx:dx + W, :]            # 9 shifted windows
            for dy in range(3) for dx in range(3)]
    patch = jnp.concatenate(taps, axis=-1)             # (N, H, W, 9*P)
    # Stride applied BEFORE the matmul: only Ho*Wo rows hit the MXU.
    patch = _decimate(patch, stride)                   # (N, Ho, Wo, 9*P)
    patch = patch.reshape(N * Ho * Wo, 9 * P)
    h2 = _bn(mm(patch, w2_ref[...]), g2_ref[...], b2_ref[...], relu=True)

    # ---- stage 3: conv3 (1x1) -> bn3 (no relu yet) -------------------------
    h3 = _bn(mm(h2, w3_ref[...]), g3_ref[...], b3_ref[...], relu=False)

    # ---- shortcut: 1x1 projection conv (stride) + bn, or identity ----------
    if has_proj:
        xs = x2d if stride == 1 else _decimate(x, stride).reshape(
            N * Ho * Wo, Cin)
        sc = _bn(mm(xs, ws_ref[...]), gs_ref[...], bs_ref[...], relu=False)
    else:
        sc = x2d  # identity: stride == 1 and Cin == EXPANSION * P

    out = jnp.maximum(h3 + sc, 0.0)                    # (N*Ho*Wo, Cout)
    # Lane-dense store: channel-major (Cout, N*Ho*Wo); the 2-D transpose is a
    # cheap XLU op, and the HBM store becomes full-lane (no masked vst).
    o_ref[...] = out.T


def bottleneck_forward(x_nchw, params, *, stride=1, mxu_dtype=jnp.float32):
    """NCHW in / NCHW out; the whole block runs in one fused Pallas kernel."""
    x = jnp.transpose(x_nchw, (0, 2, 3, 1)).astype(jnp.float32)  # NCHW -> NHWC
    N, H, W, Cin = x.shape
    P = params["w1"].shape[1]
    Cout = EXPANSION * P
    has_proj = (stride != 1) or (Cin != Cout)
    Ho = (H - 1) // stride + 1
    Wo = (W - 1) // stride + 1

    # conv2 weights pre-flattened for the im2col matmul:
    # HWIO (3,3,P,P) -> (9*P, P); channel order = (tap(dy,dx), cin) to match
    # the in-kernel window concatenation order.
    w2r = params["w2"].reshape(9 * P, P)

    args = [x, params["w1"], params["g1"], params["b1"],
            w2r, params["g2"], params["b2"],
            params["w3"], params["g3"], params["b3"]]
    if has_proj:
        args += [params["ws"], params["gs"], params["bs"]]

    vmem = pl.BlockSpec(memory_space=pltpu.MemorySpace.VMEM)
    out_t = pl.pallas_call(
        functools.partial(_bottleneck_kernel, N, H, W, Cin, P, stride,
                          has_proj, mxu_dtype),
        out_shape=jax.ShapeDtypeStruct((Cout, N * Ho * Wo), jnp.float32),
        in_specs=[vmem] * len(args),
        out_specs=vmem,
        compiler_params=pltpu.CompilerParams(
            vmem_limit_bytes=32 * 1024 * 1024),
    )(*args)

    # (Cout, N*Ho*Wo) channel-major -> NCHW: only a leading-axis transpose.
    out = out_t.reshape(Cout, N, Ho, Wo)
    return jnp.transpose(out, (1, 0, 2, 3))


def _reference_forward(x_nchw, params, *, stride=1):
    """Pure-JAX reference mirroring the PyTorch forward (training-mode BN)."""
    x = jnp.transpose(x_nchw, (0, 2, 3, 1)).astype(jnp.float32)
    dn = ("NHWC", "HWIO", "NHWC")

    def conv(h, w, s, pad):
        if w.ndim == 2:
            w = w[None, None]
        return lax.conv_general_dilated(h, w, (s, s), pad, dimension_numbers=dn)

    def bn(h, g, b, relu):
        mean = jnp.mean(h, axis=(0, 1, 2), keepdims=True)
        var = jnp.mean((h - mean) ** 2, axis=(0, 1, 2), keepdims=True)
        y = (h - mean) * (g.reshape(1, 1, 1, -1) * lax.rsqrt(var + BN_EPS)) \
            + b.reshape(1, 1, 1, -1)
        return jnp.maximum(y, 0.0) if relu else y

    P = params["w1"].shape[1]
    Cin = x.shape[-1]
    has_proj = (stride != 1) or (Cin != EXPANSION * P)

    h = bn(conv(x, params["w1"], 1, [(0, 0), (0, 0)]),
           params["g1"], params["b1"], True)
    h = bn(conv(h, params["w2"], stride, [(1, 1), (1, 1)]),
           params["g2"], params["b2"], True)
    h = bn(conv(h, params["w3"], 1, [(0, 0), (0, 0)]),
           params["g3"], params["b3"], False)
    if has_proj:
        s = bn(conv(x, params["ws"], stride, [(0, 0), (0, 0)]),
               params["gs"], params["bs"], False)
    else:
        s = x
    out = jnp.maximum(h + s, 0.0)
    return jnp.transpose(out, (0, 3, 1, 2))


if __name__ == "__main__":
    key = jax.random.PRNGKey(0)

    def nrm(k, shape, scale=0.1):
        return scale * jax.random.normal(k, shape, dtype=jnp.float32)

    def make_params(k, cin, planes):
        cout = EXPANSION * planes
        ks = jax.random.split(k, 12)
        # Weights pre-reshaped for NHWC matmul form:
        #  conv 1x1 (Cout,Cin,1,1) -> (Cin, Cout);  conv 3x3 -> HWIO (3,3,I,O)
        return dict(
            w1=nrm(ks[0], (cin, planes)),
            g1=1.0 + nrm(ks[1], (1, planes)), b1=nrm(ks[2], (1, planes)),
            w2=nrm(ks[3], (3, 3, planes, planes)),
            g2=1.0 + nrm(ks[4], (1, planes)), b2=nrm(ks[5], (1, planes)),
            w3=nrm(ks[6], (planes, cout)),
            g3=1.0 + nrm(ks[7], (1, cout)), b3=nrm(ks[8], (1, cout)),
            ws=nrm(ks[9], (cin, cout)),
            gs=1.0 + nrm(ks[10], (1, cout)), bs=nrm(ks[11], (1, cout)),
        )

    N, H, W, planes = 2, 8, 8, 8
    # (name, in_planes, stride): projection shortcut, then identity shortcut.
    cases = [("projection", 16, 1), ("identity", 32, 1)]
    keys = jax.random.split(key, 2 * len(cases))

    for idx, (name, cin, stride) in enumerate(cases):
        params = make_params(keys[2 * idx], cin, planes)
        x = jax.random.normal(keys[2 * idx + 1], (N, cin, H, W),
                              dtype=jnp.float32)  # NCHW, like PyTorch

        out = jax.block_until_ready(bottleneck_forward(x, params, stride=stride))
        ref = _reference_forward(x, params, stride=stride)

        ho = (H - 1) // stride + 1
        wo = (W - 1) // stride + 1
        assert out.shape == (N, EXPANSION * planes, ho, wo), (name, out.shape)
        err = float(jnp.max(jnp.abs(out - ref)))
        assert jnp.allclose(out, ref, atol=2e-4, rtol=2e-4), (name, err)

    print("KERNEL_OK")
</pallas_src>

<mosaic_0001>
module attributes {stable_mosaic.version = 11 : i64} {
  func.func @_bottleneck_kernel(%arg0: memref<2x8x8x16xf32, #tpu.memory_space<vmem>>, %arg1: memref<16x8xf32, #tpu.memory_space<vmem>>, %arg2: memref<1x8xf32, #tpu.memory_space<vmem>>, %arg3: memref<1x8xf32, #tpu.memory_space<vmem>>, %arg4: memref<72x8xf32, #tpu.memory_space<vmem>>, %arg5: memref<1x8xf32, #tpu.memory_space<vmem>>, %arg6: memref<1x8xf32, #tpu.memory_space<vmem>>, %arg7: memref<8x32xf32, #tpu.memory_space<vmem>>, %arg8: memref<1x32xf32, #tpu.memory_space<vmem>>, %arg9: memref<1x32xf32, #tpu.memory_space<vmem>>, %arg10: memref<16x32xf32, #tpu.memory_space<vmem>>, %arg11: memref<1x32xf32, #tpu.memory_space<vmem>>, %arg12: memref<1x32xf32, #tpu.memory_space<vmem>>, %arg13: memref<32x128xf32, #tpu.memory_space<vmem>>) attributes {dimension_semantics = [], scalar_prefetch = 0 : i64, scratch_operands = 0 : i64, tpu.core_type = #tpu.core_type<tc>} {
    %c0 = arith.constant 0 : index
    %c0_0 = arith.constant 0 : index
    %c0_1 = arith.constant 0 : index
    %c0_2 = arith.constant 0 : index
    %0 = vector.load %arg0[%c0, %c0_0, %c0_1, %c0_2] : memref<2x8x8x16xf32, #tpu.memory_space<vmem>>, vector<2x8x8x16xf32>
    %1 = vector.shape_cast %0 : vector<2x8x8x16xf32> to vector<128x16xf32>
    %c0_3 = arith.constant 0 : index
    %c0_4 = arith.constant 0 : index
    %2 = vector.load %arg1[%c0_3, %c0_4] : memref<16x8xf32, #tpu.memory_space<vmem>>, vector<16x8xf32>
    %cst = arith.constant dense<0.000000e+00> : vector<128x8xf32>
    %3 = tpu.matmul %1, %2, %cst {dimension_numbers = #tpu.dot_dimension_numbers<[1], [0], [0], [1], [0, 0, 1, 1], [], []>} : vector<128x16xf32>, vector<16x8xf32>, vector<128x8xf32> -> vector<128x8xf32>
    %c0_5 = arith.constant 0 : index
    %c0_6 = arith.constant 0 : index
    %4 = vector.load %arg2[%c0_5, %c0_6] : memref<1x8xf32, #tpu.memory_space<vmem>>, vector<1x8xf32>
    %c0_7 = arith.constant 0 : index
    %c0_8 = arith.constant 0 : index
    %5 = vector.load %arg3[%c0_7, %c0_8] : memref<1x8xf32, #tpu.memory_space<vmem>>, vector<1x8xf32>
    %cst_9 = arith.constant dense<0.000000e+00> : vector<8xf32>
    %6 = vector.multi_reduction <add>, %3, %cst_9 [0] : vector<128x8xf32> to vector<8xf32>
    %7 = vector.shape_cast %6 : vector<8xf32> to vector<1x8xf32>
    %cst_10 = arith.constant 1.280000e+02 : f32
    %8 = vector.broadcast %cst_10 : f32 to vector<1x8xf32>
    %9 = arith.divf %7, %8 : vector<1x8xf32>
    %10 = vector.broadcast %9 : vector<1x8xf32> to vector<128x8xf32>
    %11 = arith.subf %3, %10 : vector<128x8xf32>
    %12 = arith.mulf %11, %11 : vector<128x8xf32>
    %cst_11 = arith.constant dense<0.000000e+00> : vector<8xf32>
    %13 = vector.multi_reduction <add>, %12, %cst_11 [0] : vector<128x8xf32> to vector<8xf32>
    %14 = vector.shape_cast %13 : vector<8xf32> to vector<1x8xf32>
    %cst_12 = arith.constant 1.280000e+02 : f32
    %15 = vector.broadcast %cst_12 : f32 to vector<1x8xf32>
    %16 = arith.divf %14, %15 : vector<1x8xf32>
    %cst_13 = arith.constant 9.99999974E-6 : f32
    %17 = vector.broadcast %cst_13 : f32 to vector<1x8xf32>
    %18 = arith.addf %16, %17 : vector<1x8xf32>
    %19 = math.rsqrt %18 : vector<1x8xf32>
    %20 = arith.mulf %4, %19 : vector<1x8xf32>
    %21 = vector.broadcast %20 : vector<1x8xf32> to vector<128x8xf32>
    %22 = arith.mulf %11, %21 : vector<128x8xf32>
    %23 = vector.broadcast %5 : vector<1x8xf32> to vector<128x8xf32>
    %24 = arith.addf %22, %23 : vector<128x8xf32>
    %cst_14 = arith.constant 0.000000e+00 : f32
    %25 = vector.broadcast %cst_14 : f32 to vector<128x8xf32>
    %26 = arith.maximumf %24, %25 : vector<128x8xf32>
    %27 = vector.shape_cast %26 : vector<128x8xf32> to vector<2x8x8x8xf32>
    %cst_15 = arith.constant 0.000000e+00 : f32
    %28 = vector.broadcast %cst_15 : f32 to vector<2x1x8x8xf32>
    %29 = tpu.concatenate %28, %27, %28 in 1 : vector<2x1x8x8xf32>, vector<2x8x8x8xf32>, vector<2x1x8x8xf32> -> vector<2x10x8x8xf32>
    %cst_16 = arith.constant 0.000000e+00 : f32
    %30 = vector.broadcast %cst_16 : f32 to vector<2x10x1x8xf32>
    %31 = tpu.concatenate %30, %29, %30 in 2 : vector<2x10x1x8xf32>, vector<2x10x8x8xf32>, vector<2x10x1x8xf32> -> vector<2x10x10x8xf32>
    %32 = vector.extract_strided_slice %31 {offsets = [0, 0, 0, 0], sizes = [2, 8, 8, 8], strides = [1, 1, 1, 1]} : vector<2x10x10x8xf32> to vector<2x8x8x8xf32>
    %33 = vector.extract_strided_slice %31 {offsets = [0, 0, 1, 0], sizes = [2, 8, 8, 8], strides = [1, 1, 1, 1]} : vector<2x10x10x8xf32> to vector<2x8x8x8xf32>
    %34 = vector.extract_strided_slice %31 {offsets = [0, 0, 2, 0], sizes = [2, 8, 8, 8], strides = [1, 1, 1, 1]} : vector<2x10x10x8xf32> to vector<2x8x8x8xf32>
    %35 = vector.extract_strided_slice %31 {offsets = [0, 1, 0, 0], sizes = [2, 8, 8, 8], strides = [1, 1, 1, 1]} : vector<2x10x10x8xf32> to vector<2x8x8x8xf32>
    %36 = vector.extract_strided_slice %31 {offsets = [0, 1, 1, 0], sizes = [2, 8, 8, 8], strides = [1, 1, 1, 1]} : vector<2x10x10x8xf32> to vector<2x8x8x8xf32>
    %37 = vector.extract_strided_slice %31 {offsets = [0, 1, 2, 0], sizes = [2, 8, 8, 8], strides = [1, 1, 1, 1]} : vector<2x10x10x8xf32> to vector<2x8x8x8xf32>
    %38 = vector.extract_strided_slice %31 {offsets = [0, 2, 0, 0], sizes = [2, 8, 8, 8], strides = [1, 1, 1, 1]} : vector<2x10x10x8xf32> to vector<2x8x8x8xf32>
    %39 = vector.extract_strided_slice %31 {offsets = [0, 2, 1, 0], sizes = [2, 8, 8, 8], strides = [1, 1, 1, 1]} : vector<2x10x10x8xf32> to vector<2x8x8x8xf32>
    %40 = vector.extract_strided_slice %31 {offsets = [0, 2, 2, 0], sizes = [2, 8, 8, 8], strides = [1, 1, 1, 1]} : vector<2x10x10x8xf32> to vector<2x8x8x8xf32>
    %41 = tpu.concatenate %32, %33, %34, %35, %36, %37, %38, %39, %40 in 3 : vector<2x8x8x8xf32>, vector<2x8x8x8xf32>, vector<2x8x8x8xf32>, vector<2x8x8x8xf32>, vector<2x8x8x8xf32>, vector<2x8x8x8xf32>, vector<2x8x8x8xf32>, vector<2x8x8x8xf32>, vector<2x8x8x8xf32> -> vector<2x8x8x72xf32>
    %42 = vector.shape_cast %41 : vector<2x8x8x72xf32> to vector<128x72xf32>
    %c0_17 = arith.constant 0 : index
    %c0_18 = arith.constant 0 : index
    %43 = vector.load %arg4[%c0_17, %c0_18] : memref<72x8xf32, #tpu.memory_space<vmem>>, vector<72x8xf32>
    %cst_19 = arith.constant dense<0.000000e+00> : vector<128x8xf32>
    %44 = tpu.matmul %42, %43, %cst_19 {dimension_numbers = #tpu.dot_dimension_numbers<[1], [0], [0], [1], [0, 0, 1, 1], [], []>} : vector<128x72xf32>, vector<72x8xf32>, vector<128x8xf32> -> vector<128x8xf32>
    %c0_20 = arith.constant 0 : index
    %c0_21 = arith.constant 0 : index
    %45 = vector.load %arg5[%c0_20, %c0_21] : memref<1x8xf32, #tpu.memory_space<vmem>>, vector<1x8xf32>
    %c0_22 = arith.constant 0 : index
    %c0_23 = arith.constant 0 : index
    %46 = vector.load %arg6[%c0_22, %c0_23] : memref<1x8xf32, #tpu.memory_space<vmem>>, vector<1x8xf32>
    %cst_24 = arith.constant dense<0.000000e+00> : vector<8xf32>
    %47 = vector.multi_reduction <add>, %44, %cst_24 [0] : vector<128x8xf32> to vector<8xf32>
    %48 = vector.shape_cast %47 : vector<8xf32> to vector<1x8xf32>
    %cst_25 = arith.constant 1.280000e+02 : f32
    %49 = vector.broadcast %cst_25 : f32 to vector<1x8xf32>
    %50 = arith.divf %48, %49 : vector<1x8xf32>
    %51 = vector.broadcast %50 : vector<1x8xf32> to vector<128x8xf32>
    %52 = arith.subf %44, %51 : vector<128x8xf32>
    %53 = arith.mulf %52, %52 : vector<128x8xf32>
    %cst_26 = arith.constant dense<0.000000e+00> : vector<8xf32>
    %54 = vector.multi_reduction <add>, %53, %cst_26 [0] : vector<128x8xf32> to vector<8xf32>
    %55 = vector.shape_cast %54 : vector<8xf32> to vector<1x8xf32>
    %cst_27 = arith.constant 1.280000e+02 : f32
    %56 = vector.broadcast %cst_27 : f32 to vector<1x8xf32>
    %57 = arith.divf %55, %56 : vector<1x8xf32>
    %cst_28 = arith.constant 9.99999974E-6 : f32
    %58 = vector.broadcast %cst_28 : f32 to vector<1x8xf32>
    %59 = arith.addf %57, %58 : vector<1x8xf32>
    %60 = math.rsqrt %59 : vector<1x8xf32>
    %61 = arith.mulf %45, %60 : vector<1x8xf32>
    %62 = vector.broadcast %61 : vector<1x8xf32> to vector<128x8xf32>
    %63 = arith.mulf %52, %62 : vector<128x8xf32>
    %64 = vector.broadcast %46 : vector<1x8xf32> to vector<128x8xf32>
    %65 = arith.addf %63, %64 : vector<128x8xf32>
    %cst_29 = arith.constant 0.000000e+00 : f32
    %66 = vector.broadcast %cst_29 : f32 to vector<128x8xf32>
    %67 = arith.maximumf %65, %66 : vector<128x8xf32>
    %c0_30 = arith.constant 0 : index
    %c0_31 = arith.constant 0 : index
    %68 = vector.load %arg7[%c0_30, %c0_31] : memref<8x32xf32, #tpu.memory_space<vmem>>, vector<8x32xf32>
    %cst_32 = arith.constant dense<0.000000e+00> : vector<128x32xf32>
    %69 = tpu.matmul %67, %68, %cst_32 {dimension_numbers = #tpu.dot_dimension_numbers<[1], [0], [0], [1], [0, 0, 1, 1], [], []>} : vector<128x8xf32>, vector<8x32xf32>, vector<128x32xf32> -> vector<128x32xf32>
    %c0_33 = arith.constant 0 : index
    %c0_34 = arith.constant 0 : index
    %70 = vector.load %arg8[%c0_33, %c0_34] : memref<1x32xf32, #tpu.memory_space<vmem>>, vector<1x32xf32>
    %c0_35 = arith.constant 0 : index
    %c0_36 = arith.constant 0 : index
    %71 = vector.load %arg9[%c0_35, %c0_36] : memref<1x32xf32, #tpu.memory_space<vmem>>, vector<1x32xf32>
    %cst_37 = arith.constant dense<0.000000e+00> : vector<32xf32>
    %72 = vector.multi_reduction <add>, %69, %cst_37 [0] : vector<128x32xf32> to vector<32xf32>
    %73 = vector.shape_cast %72 : vector<32xf32> to vector<1x32xf32>
    %cst_38 = arith.constant 1.280000e+02 : f32
    %74 = vector.broadcast %cst_38 : f32 to vector<1x32xf32>
    %75 = arith.divf %73, %74 : vector<1x32xf32>
    %76 = vector.broadcast %75 : vector<1x32xf32> to vector<128x32xf32>
    %77 = arith.subf %69, %76 : vector<128x32xf32>
    %78 = arith.mulf %77, %77 : vector<128x32xf32>
    %cst_39 = arith.constant dense<0.000000e+00> : vector<32xf32>
    %79 = vector.multi_reduction <add>, %78, %cst_39 [0] : vector<128x32xf32> to vector<32xf32>
    %80 = vector.shape_cast %79 : vector<32xf32> to vector<1x32xf32>
    %cst_40 = arith.constant 1.280000e+02 : f32
    %81 = vector.broadcast %cst_40 : f32 to vector<1x32xf32>
    %82 = arith.divf %80, %81 : vector<1x32xf32>
    %cst_41 = arith.constant 9.99999974E-6 : f32
    %83 = vector.broadcast %cst_41 : f32 to vector<1x32xf32>
    %84 = arith.addf %82, %83 : vector<1x32xf32>
    %85 = math.rsqrt %84 : vector<1x32xf32>
    %86 = arith.mulf %70, %85 : vector<1x32xf32>
    %87 = vector.broadcast %86 : vector<1x32xf32> to vector<128x32xf32>
    %88 = arith.mulf %77, %87 : vector<128x32xf32>
    %89 = vector.broadcast %71 : vector<1x32xf32> to vector<128x32xf32>
    %90 = arith.addf %88, %89 : vector<128x32xf32>
    %c0_42 = arith.constant 0 : index
    %c0_43 = arith.constant 0 : index
    %91 = vector.load %arg10[%c0_42, %c0_43] : memref<16x32xf32, #tpu.memory_space<vmem>>, vector<16x32xf32>
    %cst_44 = arith.constant dense<0.000000e+00> : vector<128x32xf32>
    %92 = tpu.matmul %1, %91, %cst_44 {dimension_numbers = #tpu.dot_dimension_numbers<[1], [0], [0], [1], [0, 0, 1, 1], [], []>} : vector<128x16xf32>, vector<16x32xf32>, vector<128x32xf32> -> vector<128x32xf32>
    %c0_45 = arith.constant 0 : index
    %c0_46 = arith.constant 0 : index
    %93 = vector.load %arg11[%c0_45, %c0_46] : memref<1x32xf32, #tpu.memory_space<vmem>>, vector<1x32xf32>
    %c0_47 = arith.constant 0 : index
    %c0_48 = arith.constant 0 : index
    %94 = vector.load %arg12[%c0_47, %c0_48] : memref<1x32xf32, #tpu.memory_space<vmem>>, vector<1x32xf32>
    %cst_49 = arith.constant dense<0.000000e+00> : vector<32xf32>
    %95 = vector.multi_reduction <add>, %92, %cst_49 [0] : vector<128x32xf32> to vector<32xf32>
    %96 = vector.shape_cast %95 : vector<32xf32> to vector<1x32xf32>
    %cst_50 = arith.constant 1.280000e+02 : f32
    %97 = vector.broadcast %cst_50 : f32 to vector<1x32xf32>
    %98 = arith.divf %96, %97 : vector<1x32xf32>
    %99 = vector.broadcast %98 : vector<1x32xf32> to vector<128x32xf32>
    %100 = arith.subf %92, %99 : vector<128x32xf32>
    %101 = arith.mulf %100, %100 : vector<128x32xf32>
    %cst_51 = arith.constant dense<0.000000e+00> : vector<32xf32>
    %102 = vector.multi_reduction <add>, %101, %cst_51 [0] : vector<128x32xf32> to vector<32xf32>
    %103 = vector.shape_cast %102 : vector<32xf32> to vector<1x32xf32>
    %cst_52 = arith.constant 1.280000e+02 : f32
    %104 = vector.broadcast %cst_52 : f32 to vector<1x32xf32>
    %105 = arith.divf %103, %104 : vector<1x32xf32>
    %cst_53 = arith.constant 9.99999974E-6 : f32
    %106 = vector.broadcast %cst_53 : f32 to vector<1x32xf32>
    %107 = arith.addf %105, %106 : vector<1x32xf32>
    %108 = math.rsqrt %107 : vector<1x32xf32>
    %109 = arith.mulf %93, %108 : vector<1x32xf32>
    %110 = vector.broadcast %109 : vector<1x32xf32> to vector<128x32xf32>
    %111 = arith.mulf %100, %110 : vector<128x32xf32>
    %112 = vector.broadcast %94 : vector<1x32xf32> to vector<128x32xf32>
    %113 = arith.addf %111, %112 : vector<128x32xf32>
    %114 = arith.addf %90, %113 : vector<128x32xf32>
    %cst_54 = arith.constant 0.000000e+00 : f32
    %115 = vector.broadcast %cst_54 : f32 to vector<128x32xf32>
    %116 = arith.maximumf %114, %115 : vector<128x32xf32>
    %117 = tpu.transpose %116, [1, 0] : vector<128x32xf32> -> vector<32x128xf32>
    %c0_55 = arith.constant 0 : index
    %c0_56 = arith.constant 0 : index
    %118 = vector.load %arg13[%c0_55, %c0_56] : memref<32x128xf32, #tpu.memory_space<vmem>>, vector<32x128xf32>
    tpu.vector_store %arg13[%c0_55, %c0_56], %117 {strides = array<i32>} : memref<32x128xf32, #tpu.memory_space<vmem>>, vector<32x128xf32>,
    return
  }
}

</mosaic_0001>

<llo_original>
// kernel: tpu_custom_call.1
$region0: #{tpu_custom_call.1}
  #allocation0 [shape = 'u32[]', space=smem, size = 0x4, offset = 0x4, fixed_abs, tag = 'smem constant byte address 0x4 - core index']
  #allocation1 [shape = 'u32[72,128]{1,0:T(1,128)}', space=vmem, size = 0x9000, scoped, tag = 'internal scratch']
  %s0 = inlined_call_operand.hbm [shape: f32[2,8,8,16], index: 0, kind: input, shape index: {}]
  %s1 = inlined_call_operand.vmem [shape: f32[16,8], index: 1, kind: input, shape index: {}]
  %s2 = inlined_call_operand.vmem [shape: f32[1,8], index: 2, kind: input, shape index: {}]
  %s3 = inlined_call_operand.vmem [shape: f32[1,8], index: 3, kind: input, shape index: {}]
  %s4 = inlined_call_operand.vmem [shape: f32[72,8], index: 4, kind: input, shape index: {}]
  %s5 = inlined_call_operand.vmem [shape: f32[1,8], index: 5, kind: input, shape index: {}]
  %s6 = inlined_call_operand.vmem [shape: f32[1,8], index: 6, kind: input, shape index: {}]
  %s7 = inlined_call_operand.vmem [shape: f32[8,32], index: 7, kind: input, shape index: {}]
  %s8 = inlined_call_operand.vmem [shape: f32[1,32], index: 8, kind: input, shape index: {}]
  %s9 = inlined_call_operand.vmem [shape: f32[1,32], index: 9, kind: input, shape index: {}]
  %s10 = inlined_call_operand.vmem [shape: f32[16,32], index: 10, kind: input, shape index: {}]
  %s11 = inlined_call_operand.vmem [shape: f32[1,32], index: 11, kind: input, shape index: {}]
  %s12 = inlined_call_operand.vmem [shape: f32[1,32], index: 12, kind: input, shape index: {}]
  %s13 = inlined_call_operand.hbm [shape: f32[32,128], index: 13, kind: output, shape index: {}]
  %s14 = sld [smem:[#allocation0]]
  $region66: #{tpu_custom_call.1} parent=0
    _
  %s16 = ssub.s32 1, %s14
  %s17 = scalar_select 0, %s16, %s14
  $region1: #{tpu_custom_call.1} parent=0
    #allocation2 [shape = 'u8[65536]{0}', space=vmem, size = 0x10000, scoped, tag = 'input window, operand 0, single buffered']
    #allocation3 [shape = 's32[1]{0}', space=sflag, size = 0x4, scoped, tag = 'scoped memory for tpu_custom_call.1']
    #allocation4 [shape = 's32[1]{0}', space=sflag, size = 0x4, scoped, tag = 'scoped memory for tpu_custom_call.1']
    #allocation5 [shape = 'u8[16384]{0}', space=vmem, size = 0x4000, scoped, tag = 'output window, operand 0, single buffered']
    %18 = vsyncpa [#allocation3], 0
    %19 = vsyncpa [#allocation4], 0
    // Predicated region
    $region2: #{tpu_custom_call.1} parent=1 // pred_check
      _
    $region3: #{tpu_custom_call.1} parent=1 // pred_check_branch
      %21 = sbr.rel (0) target = $region5
    $region4: #{tpu_custom_call.1} parent=1 // pred_region
      %23 = vsyncadd [#allocation3], 0
      %s24 = sshll.u32 %s0, 4
      %s25 = int_to_ptr.hbm [resolvable:$true] %s24
      %s26 = sshll.u32 [#allocation2], 4
      %s27 = int_to_ptr.vmem [resolvable:$true] %s26
      %32 = dma.hbm_to_vmem [thread:$0]  %s25, 2048, %s27, [#allocation3], 128, 128, 8
    $region5: #{tpu_custom_call.1} parent=1 // pred_fallthru
      _
    // Predicated region
    $region6: #{tpu_custom_call.1} parent=1 // pred_check
      _
    $region7: #{tpu_custom_call.1} parent=1 // pred_check_branch
      %34 = sbr.rel (0) target = $region9
    $region8: #{tpu_custom_call.1} parent=1 // pred_region
      _
    $region9: #{tpu_custom_call.1} parent=1 // pred_fallthru
      _
    // Predicated region
    $region10: #{tpu_custom_call.1} parent=1 // pred_check
      _
    $region11: #{tpu_custom_call.1} parent=1 // pred_check_branch
      %36 = sbr.rel (0) target = $region13
    $region12: #{tpu_custom_call.1} parent=1 // pred_region
      _
    $region13: #{tpu_custom_call.1} parent=1 // pred_fallthru
      _
    // Predicated region
    $region14: #{tpu_custom_call.1} parent=1 // pred_check
      _
    $region15: #{tpu_custom_call.1} parent=1 // pred_check_branch
      %38 = sbr.rel (0) target = $region17
    $region16: #{tpu_custom_call.1} parent=1 // pred_region
      _
    $region17: #{tpu_custom_call.1} parent=1 // pred_fallthru
      _
    // Predicated region
    $region18: #{tpu_custom_call.1} parent=1 // pred_check
      _
    $region19: #{tpu_custom_call.1} parent=1 // pred_check_branch
      %40 = sbr.rel (0) target = $region21
    $region20: #{tpu_custom_call.1} parent=1 // pred_region
      _
    $region21: #{tpu_custom_call.1} parent=1 // pred_fallthru
      _
    // Predicated region
    $region22: #{tpu_custom_call.1} parent=1 // pred_check
      _
    $region23: #{tpu_custom_call.1} parent=1 // pred_check_branch
      %42 = sbr.rel (0) target = $region25
    $region24: #{tpu_custom_call.1} parent=1 // pred_region
      _
    $region25: #{tpu_custom_call.1} parent=1 // pred_fallthru
      _
    // Predicated region
    $region26: #{tpu_custom_call.1} parent=1 // pred_check
      _
    $region27: #{tpu_custom_call.1} parent=1 // pred_check_branch
      %44 = sbr.rel (0) target = $region29
    $region28: #{tpu_custom_call.1} parent=1 // pred_region
      _
    $region29: #{tpu_custom_call.1} parent=1 // pred_fallthru
      _
    // Predicated region
    $region30: #{tpu_custom_call.1} parent=1 // pred_check
      _
    $region31: #{tpu_custom_call.1} parent=1 // pred_check_branch
      %46 = sbr.rel (0) target = $region33
    $region32: #{tpu_custom_call.1} parent=1 // pred_region
      _
    $region33: #{tpu_custom_call.1} parent=1 // pred_fallthru
      _
    // Predicated region
    $region34: #{tpu_custom_call.1} parent=1 // pred_check
      _
    $region35: #{tpu_custom_call.1} parent=1 // pred_check_branch
      %48 = sbr.rel (0) target = $region37
    $region36: #{tpu_custom_call.1} parent=1 // pred_region
      _
    $region37: #{tpu_custom_call.1} parent=1 // pred_fallthru
      _
    // Predicated region
    $region38: #{tpu_custom_call.1} parent=1 // pred_check
      _
    $region39: #{tpu_custom_call.1} parent=1 // pred_check_branch
      %50 = sbr.rel (0) target = $region41
    $region40: #{tpu_custom_call.1} parent=1 // pred_region
      _
    $region41: #{tpu_custom_call.1} parent=1 // pred_fallthru
      _
    // Predicated region
    $region42: #{tpu_custom_call.1} parent=1 // pred_check
      _
    $region43: #{tpu_custom_call.1} parent=1 // pred_check_branch
      %52 = sbr.rel (0) target = $region45
    $region44: #{tpu_custom_call.1} parent=1 // pred_region
      _
    $region45: #{tpu_custom_call.1} parent=1 // pred_fallthru
      _
    // Predicated region
    $region46: #{tpu_custom_call.1} parent=1 // pred_check
      _
    $region47: #{tpu_custom_call.1} parent=1 // pred_check_branch
      %54 = sbr.rel (0) target = $region49
    $region48: #{tpu_custom_call.1} parent=1 // pred_region
      _
    $region49: #{tpu_custom_call.1} parent=1 // pred_fallthru
      _
    // Predicated region
    $region50: #{tpu_custom_call.1} parent=1 // pred_check
      _
    $region51: #{tpu_custom_call.1} parent=1 // pred_check_branch
      %56 = sbr.rel (0) target = $region53
    $region52: #{tpu_custom_call.1} parent=1 // pred_region
      _
    $region53: #{tpu_custom_call.1} parent=1 // pred_fallthru
      _
    // Predicated region
    $region54: #{tpu_custom_call.1} parent=1 // pred_check
      _
    $region55: #{tpu_custom_call.1} parent=1 // pred_check_branch
      %58 = sbr.rel (0) target = $region57
    $region56: #{tpu_custom_call.1} parent=1 // pred_region
      %60 = dma.done [#allocation3], 2048
    $region57: #{tpu_custom_call.1} parent=1 // pred_fallthru
      _
    %v61 = vld [vmem:[#allocation2] sm:$0xff]
    %v62 = vld [vmem:[#allocation2 + $0x8] sm:$0xff]
    %v63 = vld [vmem:[#allocation2 + $0x10] sm:$0xff]
    %v64 = vld [vmem:[#allocation2 + $0x18] sm:$0xff]
    %v65 = vld [vmem:[#allocation2 + $0x20] sm:$0xff]
    %v66 = vld [vmem:[#allocation2 + $0x28] sm:$0xff]
    %v67 = vld [vmem:[#allocation2 + $0x30] sm:$0xff]
    %v68 = vld [vmem:[#allocation2 + $0x38] sm:$0xff]
    %v69 = vld [vmem:[#allocation2 + $0x40] sm:$0xff]
    %v70 = vld [vmem:[#allocation2 + $0x48] sm:$0xff]
    %v71 = vld [vmem:[#allocation2 + $0x50] sm:$0xff]
    %v72 = vld [vmem:[#allocation2 + $0x58] sm:$0xff]
    %v73 = vld [vmem:[#allocation2 + $0x60] sm:$0xff]
    %v74 = vld [vmem:[#allocation2 + $0x68] sm:$0xff]
    %v75 = vld [vmem:[#allocation2 + $0x70] sm:$0xff]
    %v76 = vld [vmem:[#allocation2 + $0x78] sm:$0xff]
    %v77 = vld [vmem:[%s1] sm:$0xff]
    %v78 = vld [vmem:[%s1 + $0x8] sm:$0xff]
    %vm79 = vcmask 130048
    %v81 = vsel %vm79, %v61, 0
    %v84 = vsel %vm79, %v62, 0
    %v87 = vsel %vm79, %v63, 0
    %v90 = vsel %vm79, %v64, 0
    %v93 = vsel %vm79, %v65, 0
    %v96 = vsel %vm79, %v66, 0
    %v99 = vsel %vm79, %v67, 0
    %v102 = vsel %vm79, %v68, 0
    %v105 = vsel %vm79, %v69, 0
    %v108 = vsel %vm79, %v70, 0
    %v111 = vsel %vm79, %v71, 0
    %v114 = vsel %vm79, %v72, 0
    %v117 = vsel %vm79, %v73, 0
    %v120 = vsel %vm79, %v74, 0
    %v123 = vsel %vm79, %v75, 0
    %v126 = vsel %vm79, %v76, 0
    %128 = vmatpush.msra.mxu0 0.0
    %129 = vmatpush.msra.mxu0 0.0
    %130 = vmatpush.msra.mxu0 0.0
    %131 = vmatpush.msra.mxu0 0.0
    %132 = vmatpush.msra.mxu0 0.0
    %133 = vmatpush.msra.mxu0 0.0
    %134 = vmatpush.msra.mxu0 0.0
    %135 = vmatpush.msra.mxu0 0.0
    %136 = vmatpush.msra.mxu0 0.0
    %137 = vmatpush.msra.mxu0 0.0
    %138 = vmatpush.msra.mxu0 0.0
    %139 = vmatpush.msra.mxu0 0.0
    %140 = vmatpush.msra.mxu0 0.0
    %141 = vmatpush.msra.mxu0 0.0
    %142 = vmatpush.msra.mxu0 %v78
    %143 = vmatpush.msra.mxu0 %v77
    %144 = vmatmul.f32.gmra.mxu0 %v81
    %v145 = vpop.f32.mrf.mxu0
    %v146 = vadd.f32 0.0, %v145
    %147 = vmatmul.f32.gmra.mxu0 %v84
    %v148 = vpop.f32.mrf.mxu0
    %v149 = vadd.f32 0.0, %v148
    %150 = vmatmul.f32.gmra.mxu0 %v87
    %v151 = vpop.f32.mrf.mxu0
    %v152 = vadd.f32 0.0, %v151
    %153 = vmatmul.f32.gmra.mxu0 %v90
    %v154 = vpop.f32.mrf.mxu0
    %v155 = vadd.f32 0.0, %v154
    %156 = vmatmul.f32.gmra.mxu0 %v93
    %v157 = vpop.f32.mrf.mxu0
    %v158 = vadd.f32 0.0, %v157
    %159 = vmatmul.f32.gmra.mxu0 %v96
    %v160 = vpop.f32.mrf.mxu0
    %v161 = vadd.f32 0.0, %v160
    %162 = vmatmul.f32.gmra.mxu0 %v99
    %v163 = vpop.f32.mrf.mxu0
    %v164 = vadd.f32 0.0, %v163
    %165 = vmatmul.f32.gmra.mxu0 %v102
    %v166 = vpop.f32.mrf.mxu0
    %v167 = vadd.f32 0.0, %v166
    %168 = vmatmul.f32.gmra.mxu0 %v105
    %v169 = vpop.f32.mrf.mxu0
    %v170 = vadd.f32 0.0, %v169
    %171 = vmatmul.f32.gmra.mxu0 %v108
    %v172 = vpop.f32.mrf.mxu0
    %v173 = vadd.f32 0.0, %v172
    %174 = vmatmul.f32.gmra.mxu0 %v111
    %v175 = vpop.f32.mrf.mxu0
    %v176 = vadd.f32 0.0, %v175
    %177 = vmatmul.f32.gmra.mxu0 %v114
    %v178 = vpop.f32.mrf.mxu0
    %v179 = vadd.f32 0.0, %v178
    %180 = vmatmul.f32.gmra.mxu0 %v117
    %v181 = vpop.f32.mrf.mxu0
    %v182 = vadd.f32 0.0, %v181
    %183 = vmatmul.f32.gmra.mxu0 %v120
    %v184 = vpop.f32.mrf.mxu0
    %v185 = vadd.f32 0.0, %v184
    %186 = vmatmul.f32.gmra.mxu0 %v123
    %v187 = vpop.f32.mrf.mxu0
    %v188 = vadd.f32 0.0, %v187
    %189 = vmatmul.f32.gmra.mxu0 %v126
    %v190 = vpop.f32.mrf.mxu0
    %v191 = vadd.f32 0.0, %v190
    %192 = vdwg.mxu0
    %v193 = vld [vmem:[%s2] sm:$0x1]
    %v194 = vld [vmem:[%s3] sm:$0x1]
    %vm195 = vcmask 64512
    %v196 = vsel %vm195, %v146, 0.0
    %v197 = vsel %vm195, %v149, 0.0
    %v198 = vadd.f32 %v196, %v197
    %v199 = vsel %vm195, %v152, 0.0
    %v200 = vadd.f32 %v198, %v199
    %v201 = vsel %vm195, %v155, 0.0
    %v202 = vadd.f32 %v200, %v201
    %v203 = vsel %vm195, %v158, 0.0
    %v204 = vadd.f32 %v202, %v203
    %v205 = vsel %vm195, %v161, 0.0
    %v206 = vadd.f32 %v204, %v205
    %v207 = vsel %vm195, %v164, 0.0
    %v208 = vadd.f32 %v206, %v207
    %v209 = vsel %vm195, %v167, 0.0
    %v210 = vadd.f32 %v208, %v209
    %v211 = vsel %vm195, %v170, 0.0
    %v212 = vadd.f32 %v210, %v211
    %v213 = vsel %vm195, %v173, 0.0
    %v214 = vadd.f32 %v212, %v213
    %v215 = vsel %vm195, %v176, 0.0
    %v216 = vadd.f32 %v214, %v215
    %v217 = vsel %vm195, %v179, 0.0
    %v218 = vadd.f32 %v216, %v217
    %v219 = vsel %vm195, %v182, 0.0
    %v220 = vadd.f32 %v218, %v219
    %v221 = vsel %vm195, %v185, 0.0
    %v222 = vadd.f32 %v220, %v221
    %v223 = vsel %vm195, %v188, 0.0
    %v224 = vadd.f32 %v222, %v223
    %v225 = vsel %vm195, %v191, 0.0
    %v226 = vadd.f32 %v224, %v225
    %v227 = vrot.slane %v226, 4
    %v228 = vadd.f32 %v226, %v227
    %v229 = vrot.slane %v228, 2
    %v230 = vadd.f32 %v228, %v229
    %v231 = vrot.slane %v230, 1
    %v232 = vadd.f32 %v230, %v231
    %v233 = vrcp.pop 128.0
    %v234 = vmul.f32 128.0, %v233
    %v235 = vsub.f32 1.0, %v234
    %v236 = vmul.f32 %v233, %v235
    %v237 = vadd.f32 %v233, %v236
    %vm238 = vweird.f32 %v233
    %v239 = vsel %vm238, %v233, %v237
    %v240 = vmul.f32 %v232, %v239
    %v241 = vsub.f32 %v146, %v240
    %v242 = vsub.f32 %v149, %v240
    %v243 = vsub.f32 %v152, %v240
    %v244 = vsub.f32 %v155, %v240
    %v245 = vsub.f32 %v158, %v240
    %v246 = vsub.f32 %v161, %v240
    %v247 = vsub.f32 %v164, %v240
    %v248 = vsub.f32 %v167, %v240
    %v249 = vsub.f32 %v170, %v240
    %v250 = vsub.f32 %v173, %v240
    %v251 = vsub.f32 %v176, %v240
    %v252 = vsub.f32 %v179, %v240
    %v253 = vsub.f32 %v182, %v240
    %v254 = vsub.f32 %v185, %v240
    %v255 = vsub.f32 %v188, %v240
    %v256 = vsub.f32 %v191, %v240
    %v257 = vmul.f32 %v241, %v241
    %v258 = vmul.f32 %v242, %v242
    %v259 = vmul.f32 %v243, %v243
    %v260 = vmul.f32 %v244, %v244
    %v261 = vmul.f32 %v245, %v245
    %v262 = vmul.f32 %v246, %v246
    %v263 = vmul.f32 %v247, %v247
    %v264 = vmul.f32 %v248, %v248
    %v265 = vmul.f32 %v249, %v249
    %v266 = vmul.f32 %v250, %v250
    %v267 = vmul.f32 %v251, %v251
    %v268 = vmul.f32 %v252, %v252
    %v269 = vmul.f32 %v253, %v253
    %v270 = vmul.f32 %v254, %v254
    %v271 = vmul.f32 %v255, %v255
    %v272 = vmul.f32 %v256, %v256
    %v273 = vsel %vm195, %v257, 0.0
    %v274 = vsel %vm195, %v258, 0.0
    %v275 = vadd.f32 %v273, %v274
    %v276 = vsel %vm195, %v259, 0.0
    %v277 = vadd.f32 %v275, %v276
    %v278 = vsel %vm195, %v260, 0.0
    %v279 = vadd.f32 %v277, %v278
    %v280 = vsel %vm195, %v261, 0.0
    %v281 = vadd.f32 %v279, %v280
    %v282 = vsel %vm195, %v262, 0.0
    %v283 = vadd.f32 %v281, %v282
    %v284 = vsel %vm195, %v263, 0.0
    %v285 = vadd.f32 %v283, %v284
    %v286 = vsel %vm195, %v264, 0.0
    %v287 = vadd.f32 %v285, %v286
    %v288 = vsel %vm195, %v265, 0.0
    %v289 = vadd.f32 %v287, %v288
    %v290 = vsel %vm195, %v266, 0.0
    %v291 = vadd.f32 %v289, %v290
    %v292 = vsel %vm195, %v267, 0.0
    %v293 = vadd.f32 %v291, %v292
    %v294 = vsel %vm195, %v268, 0.0
    %v295 = vadd.f32 %v293, %v294
    %v296 = vsel %vm195, %v269, 0.0
    %v297 = vadd.f32 %v295, %v296
    %v298 = vsel %vm195, %v270, 0.0
    %v299 = vadd.f32 %v297, %v298
    %v300 = vsel %vm195, %v271, 0.0
    %v301 = vadd.f32 %v299, %v300
    %v302 = vsel %vm195, %v272, 0.0
    %v303 = vadd.f32 %v301, %v302
    %v304 = vrot.slane %v303, 4
    %v305 = vadd.f32 %v303, %v304
    %v306 = vrot.slane %v305, 2
    %v307 = vadd.f32 %v305, %v306
    %v308 = vrot.slane %v307, 1
    %v309 = vadd.f32 %v307, %v308
    %v310 = vmul.f32 %v309, %v239
    %v311 = vadd.f32 %v310, 1e-05
    %v312 = vrsqrt.pop %v311
    %v313 = vmul.f32 %v312, %v311
    %v314 = vmul.f32 %v313, %v312
    %v315 = vmul.f32 0.5, %v314
    %v316 = vsub.f32 1.5, %v315
    %v317 = vmul.f32 %v312, %v316
    %vm318 = vweird.f32 %v311
    %vm319 = vweird.f32 %v312
    %vm320 = vmor %vm318, %vm319
    %v321 = vsel %vm320, %v312, %v317
    %v322 = vmul.f32 %v193, %v321
    %v324 = vperm.slane %v322, 0
    %v326 = vmul.f32 %v241, %v324
    %v327 = vmul.f32 %v242, %v324
    %v328 = vmul.f32 %v243, %v324
    %v329 = vmul.f32 %v244, %v324
    %v330 = vmul.f32 %v245, %v324
    %v331 = vmul.f32 %v246, %v324
    %v332 = vmul.f32 %v247, %v324
    %v333 = vmul.f32 %v248, %v324
    %v334 = vmul.f32 %v249, %v324
    %v335 = vmul.f32 %v250, %v324
    %v336 = vmul.f32 %v251, %v324
    %v337 = vmul.f32 %v252, %v324
    %v338 = vmul.f32 %v253, %v324
    %v339 = vmul.f32 %v254, %v324
    %v340 = vmul.f32 %v255, %v324
    %v341 = vmul.f32 %v256, %v324
    %v343 = vperm.slane %v194, 0
    %v345 = vadd.f32 %v326, %v343
    %v346 = vadd.f32 %v327, %v343
    %v347 = vadd.f32 %v328, %v343
    %v348 = vadd.f32 %v329, %v343
    %v349 = vadd.f32 %v330, %v343
    %v350 = vadd.f32 %v331, %v343
    %v351 = vadd.f32 %v332, %v343
    %v352 = vadd.f32 %v333, %v343
    %v353 = vadd.f32 %v334, %v343
    %v354 = vadd.f32 %v335, %v343
    %v355 = vadd.f32 %v336, %v343
    %v356 = vadd.f32 %v337, %v343
    %v357 = vadd.f32 %v338, %v343
    %v358 = vadd.f32 %v339, %v343
    %v359 = vadd.f32 %v340, %v343
    %v360 = vadd.f32 %v341, %v343
    %v361 = vmax.f32 %v345, 0.0
    %v362 = vmax.f32 %v346, 0.0
    %v363 = vmax.f32 %v347, 0.0
    %v364 = vmax.f32 %v348, 0.0
    %v365 = vmax.f32 %v349, 0.0
    %v366 = vmax.f32 %v350, 0.0
    %v367 = vmax.f32 %v351, 0.0
    %v368 = vmax.f32 %v352, 0.0
    %v369 = vmax.f32 %v353, 0.0
    %v370 = vmax.f32 %v354, 0.0
    %v371 = vmax.f32 %v355, 0.0
    %v372 = vmax.f32 %v356, 0.0
    %v373 = vmax.f32 %v357, 0.0
    %v374 = vmax.f32 %v358, 0.0
    %v375 = vmax.f32 %v359, 0.0
    %v376 = vmax.f32 %v360, 0.0
    %v394 = vrot.slane 0.0, 7
    %v395 = vrot.slane %v361, 7
    %v396 = vrot.slane %v362, 7
    %v397 = vrot.slane %v363, 7
    %v398 = vrot.slane %v364, 7
    %v399 = vrot.slane %v365, 7
    %v400 = vrot.slane %v366, 7
    %v401 = vrot.slane %v367, 7
    %v402 = vrot.slane %v368, 7
    %v403 = vrot.slane %v369, 7
    %v404 = vrot.slane %v370, 7
    %v405 = vrot.slane %v371, 7
    %v406 = vrot.slane %v372, 7
    %v407 = vrot.slane %v373, 7
    %v408 = vrot.slane %v374, 7
    %v409 = vrot.slane %v375, 7
    %v410 = vrot.slane %v376, 7
    %vm428 = vcmask 1040384
    %v429 = vsel %vm428, 0.0, %v394
    %v430 = vsel %vm428, 0.0, %v395
    %v431 = vsel %vm428, 0.0, %v396
    %v432 = vsel %vm428, 0.0, %v397
    %v433 = vsel %vm428, 0.0, %v398
    %v434 = vsel %vm428, 0.0, %v399
    %v435 = vsel %vm428, 0.0, %v400
    %v436 = vsel %vm428, 0.0, %v401
    %v437 = vsel %vm428, 0.0, %v402
    %v438 = vsel %vm428, 0.0, %v403
    %v439 = vsel %vm428, 0.0, %v404
    %v440 = vsel %vm428, 0.0, %v405
    %v441 = vsel %vm428, 0.0, %v406
    %v442 = vsel %vm428, 0.0, %v407
    %v443 = vsel %vm428, 0.0, %v408
    %v444 = vsel %vm428, 0.0, %v409
    %v445 = vsel %vm428, 0.0, %v410
    %v446 = vsel %vm428, %v394, 0.0
    %v447 = vsel %vm428, %v395, 0.0
    %v448 = vsel %vm428, %v396, 0.0
    %v449 = vsel %vm428, %v397, 0.0
    %v450 = vsel %vm428, %v398, 0.0
    %v451 = vsel %vm428, %v399, 0.0
    %v452 = vsel %vm428, %v400, 0.0
    %v453 = vsel %vm428, %v401, 0.0
    %v454 = vsel %vm428, %v402, 0.0
    %v455 = vsel %vm428, %v403, 0.0
    %v456 = vsel %vm428, %v404, 0.0
    %v457 = vsel %vm428, %v405, 0.0
    %v458 = vsel %vm428, %v406, 0.0
    %v459 = vsel %vm428, %v407, 0.0
    %v460 = vsel %vm428, %v408, 0.0
    %v461 = vsel %vm428, %v409, 0.0
    %v462 = vsel %vm428, %v410, 0.0
    %vm493 = vcmask 1046528
    %v494 = vrot.slane %v429, 1
    %v495 = vrot.slane %v446, 1
    %v496 = vsel %vm493, %v494, %v495
    %v497 = vrot.slane %v430, 1
    %v498 = vrot.slane %v447, 1
    %v499 = vsel %vm493, %v497, %v498
    %v500 = vrot.slane %v431, 1
    %v501 = vrot.slane %v448, 1
    %v502 = vsel %vm493, %v500, %v501
    %v503 = vrot.slane %v432, 1
    %v504 = vrot.slane %v449, 1
    %v505 = vsel %vm493, %v503, %v504
    %v506 = vrot.slane %v433, 1
    %v507 = vrot.slane %v450, 1
    %v508 = vsel %vm493, %v506, %v507
    %v509 = vrot.slane %v434, 1
    %v510 = vrot.slane %v451, 1
    %v511 = vsel %vm493, %v509, %v510
    %v512 = vrot.slane %v435, 1
    %v513 = vrot.slane %v452, 1
    %v514 = vsel %vm493, %v512, %v513
    %v515 = vrot.slane %v436, 1
    %v516 = vrot.slane %v453, 1
    %v517 = vsel %vm493, %v515, %v516
    %v518 = vrot.slane %v438, 1
    %v519 = vrot.slane %v455, 1
    %v520 = vsel %vm493, %v518, %v519
    %v521 = vrot.slane %v439, 1
    %v522 = vrot.slane %v456, 1
    %v523 = vsel %vm493, %v521, %v522
    %v524 = vrot.slane %v440, 1
    %v525 = vrot.slane %v457, 1
    %v526 = vsel %vm493, %v524, %v525
    %v527 = vrot.slane %v441, 1
    %v528 = vrot.slane %v458, 1
    %v529 = vsel %vm493, %v527, %v528
    %v530 = vrot.slane %v442, 1
    %v531 = vrot.slane %v459, 1
    %v532 = vsel %vm493, %v530, %v531
    %v533 = vrot.slane %v443, 1
    %v534 = vrot.slane %v460, 1
    %v535 = vsel %vm493, %v533, %v534
    %v536 = vrot.slane %v444, 1
    %v537 = vrot.slane %v461, 1
    %v538 = vsel %vm493, %v536, %v537
    %539 = vrot.lane.b32.xlu0 %v496, 8
    %v540 = vpop.permute.xlu0 %539
    %541 = vrot.lane.b32.xlu0 %v499, 8
    %v542 = vpop.permute.xlu0 %541
    %543 = vrot.lane.b32.xlu0 %v502, 8
    %v544 = vpop.permute.xlu0 %543
    %545 = vrot.lane.b32.xlu0 %v505, 8
    %v546 = vpop.permute.xlu0 %545
    %547 = vrot.lane.b32.xlu0 %v508, 8
    %v548 = vpop.permute.xlu0 %547
    %549 = vrot.lane.b32.xlu0 %v511, 8
    %v550 = vpop.permute.xlu0 %549
    %551 = vrot.lane.b32.xlu0 %v514, 8
    %v552 = vpop.permute.xlu0 %551
    %553 = vrot.lane.b32.xlu0 %v517, 8
    %v554 = vpop.permute.xlu0 %553
    %555 = vrot.lane.b32.xlu0 %v520, 8
    %v556 = vpop.permute.xlu0 %555
    %557 = vrot.lane.b32.xlu0 %v523, 8
    %v558 = vpop.permute.xlu0 %557
    %559 = vrot.lane.b32.xlu0 %v526, 8
    %v560 = vpop.permute.xlu0 %559
    %561 = vrot.lane.b32.xlu0 %v529, 8
    %v562 = vpop.permute.xlu0 %561
    %563 = vrot.lane.b32.xlu0 %v532, 8
    %v564 = vpop.permute.xlu0 %563
    %565 = vrot.lane.b32.xlu0 %v535, 8
    %v566 = vpop.permute.xlu0 %565
    %567 = vrot.lane.b32.xlu0 %v538, 8
    %v568 = vpop.permute.xlu0 %567
    %vm584 = vcmask 1045504
    %v585 = vrot.slane %v429, 2
    %v586 = vrot.slane %v446, 2
    %v587 = vsel %vm584, %v585, %v586
    %v588 = vrot.slane %v430, 2
    %v589 = vrot.slane %v447, 2
    %v590 = vsel %vm584, %v588, %v589
    %v591 = vrot.slane %v431, 2
    %v592 = vrot.slane %v448, 2
    %v593 = vsel %vm584, %v591, %v592
    %v594 = vrot.slane %v432, 2
    %v595 = vrot.slane %v449, 2
    %v596 = vsel %vm584, %v594, %v595
    %v597 = vrot.slane %v433, 2
    %v598 = vrot.slane %v450, 2
    %v599 = vsel %vm584, %v597, %v598
    %v600 = vrot.slane %v434, 2
    %v601 = vrot.slane %v451, 2
    %v602 = vsel %vm584, %v600, %v601
    %v603 = vrot.slane %v435, 2
    %v604 = vrot.slane %v452, 2
    %v605 = vsel %vm584, %v603, %v604
    %v606 = vrot.slane %v436, 2
    %v607 = vrot.slane %v453, 2
    %v608 = vsel %vm584, %v606, %v607
    %v609 = vrot.slane %v438, 2
    %v610 = vrot.slane %v455, 2
    %v611 = vsel %vm584, %v609, %v610
    %v612 = vrot.slane %v439, 2
    %v613 = vrot.slane %v456, 2
    %v614 = vsel %vm584, %v612, %v613
    %v615 = vrot.slane %v440, 2
    %v616 = vrot.slane %v457, 2
    %v617 = vsel %vm584, %v615, %v616
    %v618 = vrot.slane %v441, 2
    %v619 = vrot.slane %v458, 2
    %v620 = vsel %vm584, %v618, %v619
    %v621 = vrot.slane %v442, 2
    %v622 = vrot.slane %v459, 2
    %v623 = vsel %vm584, %v621, %v622
    %v624 = vrot.slane %v443, 2
    %v625 = vrot.slane %v460, 2
    %v626 = vsel %vm584, %v624, %v625
    %v627 = vrot.slane %v444, 2
    %v628 = vrot.slane %v461, 2
    %v629 = vsel %vm584, %v627, %v628
    %630 = vrot.lane.b32.xlu0 %v587, 16
    %v631 = vpop.permute.xlu0 %630
    %632 = vrot.lane.b32.xlu0 %v590, 16
    %v633 = vpop.permute.xlu0 %632
    %634 = vrot.lane.b32.xlu0 %v593, 16
    %v635 = vpop.permute.xlu0 %634
    %636 = vrot.lane.b32.xlu0 %v596, 16
    %v637 = vpop.permute.xlu0 %636
    %638 = vrot.lane.b32.xlu0 %v599, 16
    %v639 = vpop.permute.xlu0 %638
    %640 = vrot.lane.b32.xlu0 %v602, 16
    %v641 = vpop.permute.xlu0 %640
    %642 = vrot.lane.b32.xlu0 %v605, 16
    %v643 = vpop.permute.xlu0 %642
    %644 = vrot.lane.b32.xlu0 %v608, 16
    %v645 = vpop.permute.xlu0 %644
    %646 = vrot.lane.b32.xlu0 %v611, 16
    %v647 = vpop.permute.xlu0 %646
    %648 = vrot.lane.b32.xlu0 %v614, 16
    %v649 = vpop.permute.xlu0 %648
    %650 = vrot.lane.b32.xlu0 %v617, 16
    %v651 = vpop.permute.xlu0 %650
    %652 = vrot.lane.b32.xlu0 %v620, 16
    %v653 = vpop.permute.xlu0 %652
    %654 = vrot.lane.b32.xlu0 %v623, 16
    %v655 = vpop.permute.xlu0 %654
    %656 = vrot.lane.b32.xlu0 %v626, 16
    %v657 = vpop.permute.xlu0 %656
    %658 = vrot.lane.b32.xlu0 %v629, 16
    %v659 = vpop.permute.xlu0 %658
    %677 = vrot.lane.b32.xlu0 %v430, 24
    %v678 = vpop.permute.xlu0 %677
    %679 = vrot.lane.b32.xlu0 %v431, 24
    %v680 = vpop.permute.xlu0 %679
    %681 = vrot.lane.b32.xlu0 %v432, 24
    %v682 = vpop.permute.xlu0 %681
    %683 = vrot.lane.b32.xlu0 %v433, 24
    %v684 = vpop.permute.xlu0 %683
    %685 = vrot.lane.b32.xlu0 %v434, 24
    %v686 = vpop.permute.xlu0 %685
    %687 = vrot.lane.b32.xlu0 %v435, 24
    %v688 = vpop.permute.xlu0 %687
    %689 = vrot.lane.b32.xlu0 %v436, 24
    %v690 = vpop.permute.xlu0 %689
    %691 = vrot.lane.b32.xlu0 %v437, 24
    %v692 = vpop.permute.xlu0 %691
    %693 = vrot.lane.b32.xlu0 %v438, 24
    %v694 = vpop.permute.xlu0 %693
    %695 = vrot.lane.b32.xlu0 %v439, 24
    %v696 = vpop.permute.xlu0 %695
    %697 = vrot.lane.b32.xlu0 %v440, 24
    %v698 = vpop.permute.xlu0 %697
    %699 = vrot.lane.b32.xlu0 %v441, 24
    %v700 = vpop.permute.xlu0 %699
    %701 = vrot.lane.b32.xlu0 %v442, 24
    %v702 = vpop.permute.xlu0 %701
    %703 = vrot.lane.b32.xlu0 %v443, 24
    %v704 = vpop.permute.xlu0 %703
    %705 = vrot.lane.b32.xlu0 %v444, 24
    %v706 = vpop.permute.xlu0 %705
    %707 = vrot.lane.b32.xlu0 %v445, 24
    %v708 = vpop.permute.xlu0 %707
    %v727 = vrot.slane %v437, 1
    %v728 = vrot.slane %v454, 1
    %v729 = vsel %vm493, %v727, %v728
    %v730 = vrot.slane %v445, 1
    %v731 = vrot.slane %v462, 1
    %v732 = vsel %vm493, %v730, %v731
    %733 = vrot.lane.b32.xlu0 %v499, 32
    %v734 = vpop.permute.xlu0 %733
    %735 = vrot.lane.b32.xlu0 %v502, 32
    %v736 = vpop.permute.xlu0 %735
    %737 = vrot.lane.b32.xlu0 %v505, 32
    %v738 = vpop.permute.xlu0 %737
    %739 = vrot.lane.b32.xlu0 %v508, 32
    %v740 = vpop.permute.xlu0 %739
    %741 = vrot.lane.b32.xlu0 %v511, 32
    %v742 = vpop.permute.xlu0 %741
    %743 = vrot.lane.b32.xlu0 %v514, 32
    %v744 = vpop.permute.xlu0 %743
    %745 = vrot.lane.b32.xlu0 %v517, 32
    %v746 = vpop.permute.xlu0 %745
    %747 = vrot.lane.b32.xlu0 %v729, 32
    %v748 = vpop.permute.xlu0 %747
    %749 = vrot.lane.b32.xlu0 %v520, 32
    %v750 = vpop.permute.xlu0 %749
    %751 = vrot.lane.b32.xlu0 %v523, 32
    %v752 = vpop.permute.xlu0 %751
    %753 = vrot.lane.b32.xlu0 %v526, 32
    %v754 = vpop.permute.xlu0 %753
    %755 = vrot.lane.b32.xlu0 %v529, 32
    %v756 = vpop.permute.xlu0 %755
    %757 = vrot.lane.b32.xlu0 %v532, 32
    %v758 = vpop.permute.xlu0 %757
    %759 = vrot.lane.b32.xlu0 %v535, 32
    %v760 = vpop.permute.xlu0 %759
    %761 = vrot.lane.b32.xlu0 %v538, 32
    %v762 = vpop.permute.xlu0 %761
    %763 = vrot.lane.b32.xlu0 %v732, 32
    %v764 = vpop.permute.xlu0 %763
    %v781 = vrot.slane %v437, 2
    %v782 = vrot.slane %v454, 2
    %v783 = vsel %vm584, %v781, %v782
    %v784 = vrot.slane %v445, 2
    %v785 = vrot.slane %v462, 2
    %v786 = vsel %vm584, %v784, %v785
    %787 = vrot.lane.b32.xlu0 %v590, 40
    %v788 = vpop.permute.xlu0 %787
    %789 = vrot.lane.b32.xlu0 %v593, 40
    %v790 = vpop.permute.xlu0 %789
    %791 = vrot.lane.b32.xlu0 %v596, 40
    %v792 = vpop.permute.xlu0 %791
    %793 = vrot.lane.b32.xlu0 %v599, 40
    %v794 = vpop.permute.xlu0 %793
    %795 = vrot.lane.b32.xlu0 %v602, 40
    %v796 = vpop.permute.xlu0 %795
    %797 = vrot.lane.b32.xlu0 %v605, 40
    %v798 = vpop.permute.xlu0 %797
    %799 = vrot.lane.b32.xlu0 %v608, 40
    %v800 = vpop.permute.xlu0 %799
    %801 = vrot.lane.b32.xlu0 %v783, 40
    %v802 = vpop.permute.xlu0 %801
    %803 = vrot.lane.b32.xlu0 %v611, 40
    %v804 = vpop.permute.xlu0 %803
    %805 = vrot.lane.b32.xlu0 %v614, 40
    %v806 = vpop.permute.xlu0 %805
    %807 = vrot.lane.b32.xlu0 %v617, 40
    %v808 = vpop.permute.xlu0 %807
    %809 = vrot.lane.b32.xlu0 %v620, 40
    %v810 = vpop.permute.xlu0 %809
    %811 = vrot.lane.b32.xlu0 %v623, 40
    %v812 = vpop.permute.xlu0 %811
    %813 = vrot.lane.b32.xlu0 %v626, 40
    %v814 = vpop.permute.xlu0 %813
    %815 = vrot.lane.b32.xlu0 %v629, 40
    %v816 = vpop.permute.xlu0 %815
    %817 = vrot.lane.b32.xlu0 %v786, 40
    %v818 = vpop.permute.xlu0 %817
    %835 = vrot.lane.b32.xlu0 %v431, 48
    %v836 = vpop.permute.xlu0 %835
    %837 = vrot.lane.b32.xlu0 %v432, 48
    %v838 = vpop.permute.xlu0 %837
    %839 = vrot.lane.b32.xlu0 %v433, 48
    %v840 = vpop.permute.xlu0 %839
    %841 = vrot.lane.b32.xlu0 %v434, 48
    %v842 = vpop.permute.xlu0 %841
    %843 = vrot.lane.b32.xlu0 %v435, 48
    %v844 = vpop.permute.xlu0 %843
    %845 = vrot.lane.b32.xlu0 %v436, 48
    %v846 = vpop.permute.xlu0 %845
    %847 = vrot.lane.b32.xlu0 %v437, 48
    %v848 = vpop.permute.xlu0 %847
    %849 = vrot.lane.b32.xlu0 %v429, 48
    %v850 = vpop.permute.xlu0 %849
    %851 = vrot.lane.b32.xlu0 %v439, 48
    %v852 = vpop.permute.xlu0 %851
    %853 = vrot.lane.b32.xlu0 %v440, 48
    %v854 = vpop.permute.xlu0 %853
    %855 = vrot.lane.b32.xlu0 %v441, 48
    %v856 = vpop.permute.xlu0 %855
    %857 = vrot.lane.b32.xlu0 %v442, 48
    %v858 = vpop.permute.xlu0 %857
    %859 = vrot.lane.b32.xlu0 %v443, 48
    %v860 = vpop.permute.xlu0 %859
    %861 = vrot.lane.b32.xlu0 %v444, 48
    %v862 = vpop.permute.xlu0 %861
    %863 = vrot.lane.b32.xlu0 %v445, 48
    %v864 = vpop.permute.xlu0 %863
    %880 = vrot.lane.b32.xlu0 %v502, 56
    %v881 = vpop.permute.xlu0 %880
    %882 = vrot.lane.b32.xlu0 %v505, 56
    %v883 = vpop.permute.xlu0 %882
    %884 = vrot.lane.b32.xlu0 %v508, 56
    %v885 = vpop.permute.xlu0 %884
    %886 = vrot.lane.b32.xlu0 %v511, 56
    %v887 = vpop.permute.xlu0 %886
    %888 = vrot.lane.b32.xlu0 %v514, 56
    %v889 = vpop.permute.xlu0 %888
    %890 = vrot.lane.b32.xlu0 %v517, 56
    %v891 = vpop.permute.xlu0 %890
    %892 = vrot.lane.b32.xlu0 %v729, 56
    %v893 = vpop.permute.xlu0 %892
    %894 = vrot.lane.b32.xlu0 %v496, 56
    %v895 = vpop.permute.xlu0 %894
    %896 = vrot.lane.b32.xlu0 %v523, 56
    %v897 = vpop.permute.xlu0 %896
    %898 = vrot.lane.b32.xlu0 %v526, 56
    %v899 = vpop.permute.xlu0 %898
    %900 = vrot.lane.b32.xlu0 %v529, 56
    %v901 = vpop.permute.xlu0 %900
    %902 = vrot.lane.b32.xlu0 %v532, 56
    %v903 = vpop.permute.xlu0 %902
    %904 = vrot.lane.b32.xlu0 %v535, 56
    %v905 = vpop.permute.xlu0 %904
    %906 = vrot.lane.b32.xlu0 %v538, 56
    %v907 = vpop.permute.xlu0 %906
    %908 = vrot.lane.b32.xlu0 %v732, 56
    %v909 = vpop.permute.xlu0 %908
    %925 = vrot.lane.b32.xlu0 %v593, 64
    %v926 = vpop.permute.xlu0 %925
    %927 = vrot.lane.b32.xlu0 %v596, 64
    %v928 = vpop.permute.xlu0 %927
    %929 = vrot.lane.b32.xlu0 %v599, 64
    %v930 = vpop.permute.xlu0 %929
    %931 = vrot.lane.b32.xlu0 %v602, 64
    %v932 = vpop.permute.xlu0 %931
    %933 = vrot.lane.b32.xlu0 %v605, 64
    %v934 = vpop.permute.xlu0 %933
    %935 = vrot.lane.b32.xlu0 %v608, 64
    %v936 = vpop.permute.xlu0 %935
    %937 = vrot.lane.b32.xlu0 %v783, 64
    %v938 = vpop.permute.xlu0 %937
    %939 = vrot.lane.b32.xlu0 %v587, 64
    %v940 = vpop.permute.xlu0 %939
    %941 = vrot.lane.b32.xlu0 %v614, 64
    %v942 = vpop.permute.xlu0 %941
    %943 = vrot.lane.b32.xlu0 %v617, 64
    %v944 = vpop.permute.xlu0 %943
    %945 = vrot.lane.b32.xlu0 %v620, 64
    %v946 = vpop.permute.xlu0 %945
    %947 = vrot.lane.b32.xlu0 %v623, 64
    %v948 = vpop.permute.xlu0 %947
    %949 = vrot.lane.b32.xlu0 %v626, 64
    %v950 = vpop.permute.xlu0 %949
    %951 = vrot.lane.b32.xlu0 %v629, 64
    %v952 = vpop.permute.xlu0 %951
    %953 = vrot.lane.b32.xlu0 %v786, 64
    %v954 = vpop.permute.xlu0 %953
    %v970 = vsel %vm195, %v429, %v540
    %v971 = vsel %vm195, %v430, %v542
    %v972 = vsel %vm195, %v431, %v544
    %v973 = vsel %vm195, %v432, %v546
    %v974 = vsel %vm195, %v433, %v548
    %v975 = vsel %vm195, %v434, %v550
    %v976 = vsel %vm195, %v435, %v552
    %v977 = vsel %vm195, %v436, %v554
    %v978 = vsel %vm195, %v438, %v556
    %v979 = vsel %vm195, %v439, %v558
    %v980 = vsel %vm195, %v440, %v560
    %v981 = vsel %vm195, %v441, %v562
    %v982 = vsel %vm195, %v442, %v564
    %v983 = vsel %vm195, %v443, %v566
    %v984 = vsel %vm195, %v444, %v568
    %v985 = vsel %vm79, %v970, %v631
    %v986 = vsel %vm79, %v971, %v633
    %v987 = vsel %vm79, %v972, %v635
    %v988 = vsel %vm79, %v973, %v637
    %v989 = vsel %vm79, %v974, %v639
    %v990 = vsel %vm79, %v975, %v641
    %v991 = vsel %vm79, %v976, %v643
    %v992 = vsel %vm79, %v977, %v645
    %v993 = vsel %vm79, %v978, %v647
    %v994 = vsel %vm79, %v979, %v649
    %v995 = vsel %vm79, %v980, %v651
    %v996 = vsel %vm79, %v981, %v653
    %v997 = vsel %vm79, %v982, %v655
    %v998 = vsel %vm79, %v983, %v657
    %v999 = vsel %vm79, %v984, %v659
    %vm1000 = vcmask 195584
    %v1001 = vsel %vm1000, %v985, %v678
    %v1002 = vsel %vm1000, %v986, %v680
    %v1003 = vsel %vm1000, %v987, %v682
    %v1004 = vsel %vm1000, %v988, %v684
    %v1005 = vsel %vm1000, %v989, %v686
    %v1006 = vsel %vm1000, %v990, %v688
    %v1007 = vsel %vm1000, %v991, %v690
    %v1008 = vsel %vm1000, %v992, %v692
    %v1009 = vsel %vm1000, %v985, %v694
    %v1010 = vsel %vm1000, %v993, %v696
    %v1011 = vsel %vm1000, %v994, %v698
    %v1012 = vsel %vm1000, %v995, %v700
    %v1013 = vsel %vm1000, %v996, %v702
    %v1014 = vsel %vm1000, %v997, %v704
    %v1015 = vsel %vm1000, %v998, %v706
    %v1016 = vsel %vm1000, %v999, %v708
    %vm1017 = vcmask 261120
    %v1018 = vsel %vm1017, %v1001, %v734
    %v1019 = vsel %vm1017, %v1002, %v736
    %v1020 = vsel %vm1017, %v1003, %v738
    %v1021 = vsel %vm1017, %v1004, %v740
    %v1022 = vsel %vm1017, %v1005, %v742
    %v1023 = vsel %vm1017, %v1006, %v744
    %v1024 = vsel %vm1017, %v1007, %v746
    %v1025 = vsel %vm1017, %v1008, %v748
    %v1026 = vsel %vm1017, %v1009, %v750
    %v1027 = vsel %vm1017, %v1010, %v752
    %v1028 = vsel %vm1017, %v1011, %v754
    %v1029 = vsel %vm1017, %v1012, %v756
    %v1030 = vsel %vm1017, %v1013, %v758
    %v1031 = vsel %vm1017, %v1014, %v760
    %v1032 = vsel %vm1017, %v1015, %v762
    %v1033 = vsel %vm1017, %v1016, %v764
    %vm1034 = vcmask 326656
    %v1035 = vsel %vm1034, %v1018, %v788
    %v1036 = vsel %vm1034, %v1019, %v790
    %v1037 = vsel %vm1034, %v1020, %v792
    %v1038 = vsel %vm1034, %v1021, %v794
    %v1039 = vsel %vm1034, %v1022, %v796
    %v1040 = vsel %vm1034, %v1023, %v798
    %v1041 = vsel %vm1034, %v1024, %v800
    %v1042 = vsel %vm1034, %v1025, %v802
    %v1043 = vsel %vm1034, %v1026, %v804
    %v1044 = vsel %vm1034, %v1027, %v806
    %v1045 = vsel %vm1034, %v1028, %v808
    %v1046 = vsel %vm1034, %v1029, %v810
    %v1047 = vsel %vm1034, %v1030, %v812
    %v1048 = vsel %vm1034, %v1031, %v814
    %v1049 = vsel %vm1034, %v1032, %v816
    %v1050 = vsel %vm1034, %v1033, %v818
    %vm1051 = vcmask 392192
    %v1052 = vsel %vm1051, %v1035, %v836
    %v1053 = vsel %vm1051, %v1036, %v838
    %v1054 = vsel %vm1051, %v1037, %v840
    %v1055 = vsel %vm1051, %v1038, %v842
    %v1056 = vsel %vm1051, %v1039, %v844
    %v1057 = vsel %vm1051, %v1040, %v846
    %v1058 = vsel %vm1051, %v1041, %v848
    %v1059 = vsel %vm1051, %v1042, %v850
    %v1060 = vsel %vm1051, %v1043, %v852
    %v1061 = vsel %vm1051, %v1044, %v854
    %v1062 = vsel %vm1051, %v1045, %v856
    %v1063 = vsel %vm1051, %v1046, %v858
    %v1064 = vsel %vm1051, %v1047, %v860
    %v1065 = vsel %vm1051, %v1048, %v862
    %v1066 = vsel %vm1051, %v1049, %v864
    %v1067 = vsel %vm1051, %v1050, %v850
    %vm1068 = vcmask 457728
    %v1069 = vsel %vm1068, %v1052, %v881
    %v1070 = vsel %vm1068, %v1053, %v883
    %v1071 = vsel %vm1068, %v1054, %v885
    %v1072 = vsel %vm1068, %v1055, %v887
    %v1073 = vsel %vm1068, %v1056, %v889
    %v1074 = vsel %vm1068, %v1057, %v891
    %v1075 = vsel %vm1068, %v1058, %v893
    %v1076 = vsel %vm1068, %v1059, %v895
    %v1077 = vsel %vm1068, %v1060, %v897
    %v1078 = vsel %vm1068, %v1061, %v899
    %v1079 = vsel %vm1068, %v1062, %v901
    %v1080 = vsel %vm1068, %v1063, %v903
    %v1081 = vsel %vm1068, %v1064, %v905
    %v1082 = vsel %vm1068, %v1065, %v907
    %v1083 = vsel %vm1068, %v1066, %v909
    %v1084 = vsel %vm1068, %v1067, %v895
    %vm1085 = vcmask 523264
    %v1086 = vsel %vm1085, %v1069, %v926
    %v1087 = vsel %vm1085, %v1070, %v928
    %v1088 = vsel %vm1085, %v1071, %v930
    %v1089 = vsel %vm1085, %v1072, %v932
    %v1090 = vsel %vm1085, %v1073, %v934
    %v1091 = vsel %vm1085, %v1074, %v936
    %v1092 = vsel %vm1085, %v1075, %v938
    %v1093 = vsel %vm1085, %v1076, %v940
    %v1094 = vsel %vm1085, %v1077, %v942
    %v1095 = vsel %vm1085, %v1078, %v944
    %v1096 = vsel %vm1085, %v1079, %v946
    %v1097 = vsel %vm1085, %v1080, %v948
    %v1098 = vsel %vm1085, %v1081, %v950
    %v1099 = vsel %vm1085, %v1082, %v952
    %v1100 = vsel %vm1085, %v1083, %v954
    %v1101 = vsel %vm1085, %v1084, %v940
    %v1102 = vld [vmem:[%s4] sm:$0xff]
    %v1103 = vld [vmem:[%s4 + $0x8] sm:$0xff]
    %v1104 = vld [vmem:[%s4 + $0x10] sm:$0xff]
    %v1105 = vld [vmem:[%s4 + $0x18] sm:$0xff]
    %v1106 = vld [vmem:[%s4 + $0x20] sm:$0xff]
    %v1107 = vld [vmem:[%s4 + $0x28] sm:$0xff]
    %v1108 = vld [vmem:[%s4 + $0x30] sm:$0xff]
    %v1109 = vld [vmem:[%s4 + $0x38] sm:$0xff]
    %v1110 = vld [vmem:[%s4 + $0x40] sm:$0xff]
    %vm1111 = vcmask 588800
    %v1113 = vsel %vm1111, %v1086, 0
    %v1116 = vsel %vm1111, %v1087, 0
    %v1119 = vsel %vm1111, %v1088, 0
    %v1122 = vsel %vm1111, %v1089, 0
    %v1125 = vsel %vm1111, %v1090, 0
    %v1128 = vsel %vm1111, %v1091, 0
    %v1131 = vsel %vm1111, %v1092, 0
    %v1134 = vsel %vm1111, %v1093, 0
    %v1137 = vsel %vm1111, %v1094, 0
    %v1140 = vsel %vm1111, %v1095, 0
    %v1143 = vsel %vm1111, %v1096, 0
    %v1146 = vsel %vm1111, %v1097, 0
    %v1149 = vsel %vm1111, %v1098, 0
    %v1152 = vsel %vm1111, %v1099, 0
    %v1155 = vsel %vm1111, %v1100, 0
    %v1158 = vsel %vm1111, %v1101, 0
    %1160 = vmatpush.msra.mxu0 0.0
    %1161 = vmatpush.msra.mxu0 0.0
    %1162 = vmatpush.msra.mxu0 0.0
    %1163 = vmatpush.msra.mxu0 0.0
    %1164 = vmatpush.msra.mxu0 0.0
    %1165 = vmatpush.msra.mxu0 0.0
    %1166 = vmatpush.msra.mxu0 0.0
    %1167 = vmatpush.msra.mxu0 %v1110
    %1168 = vmatpush.msra.mxu0 %v1109
    %1169 = vmatpush.msra.mxu0 %v1108
    %1170 = vmatpush.msra.mxu0 %v1107
    %1171 = vmatpush.msra.mxu0 %v1106
    %1172 = vmatpush.msra.mxu0 %v1105
    %1173 = vmatpush.msra.mxu0 %v1104
    %1174 = vmatpush.msra.mxu0 %v1103
    %1175 = vmatpush.msra.mxu0 %v1102
    %1176 = vmatmul.f32.gmra.mxu0 %v1113
    %v1177 = vpop.f32.mrf.mxu0
    %v1178 = vadd.f32 0.0, %v1177
    %1179 = vmatmul.f32.gmra.mxu0 %v1116
    %v1180 = vpop.f32.mrf.mxu0
    %v1181 = vadd.f32 0.0, %v1180
    %1182 = vmatmul.f32.gmra.mxu0 %v1119
    %v1183 = vpop.f32.mrf.mxu0
    %v1184 = vadd.f32 0.0, %v1183
    %1185 = vmatmul.f32.gmra.mxu0 %v1122
    %v1186 = vpop.f32.mrf.mxu0
    %v1187 = vadd.f32 0.0, %v1186
    %1188 = vmatmul.f32.gmra.mxu0 %v1125
    %v1189 = vpop.f32.mrf.mxu0
    %v1190 = vadd.f32 0.0, %v1189
    %1191 = vmatmul.f32.gmra.mxu0 %v1128
    %v1192 = vpop.f32.mrf.mxu0
    %v1193 = vadd.f32 0.0, %v1192
    %1194 = vmatmul.f32.gmra.mxu0 %v1131
    %v1195 = vpop.f32.mrf.mxu0
    %v1196 = vadd.f32 0.0, %v1195
    %1197 = vmatmul.f32.gmra.mxu0 %v1134
    %v1198 = vpop.f32.mrf.mxu0
    %v1199 = vadd.f32 0.0, %v1198
    %1200 = vmatmul.f32.gmra.mxu0 %v1137
    %v1201 = vpop.f32.mrf.mxu0
    %v1202 = vadd.f32 0.0, %v1201
    %1203 = vmatmul.f32.gmra.mxu0 %v1140
    %v1204 = vpop.f32.mrf.mxu0
    %v1205 = vadd.f32 0.0, %v1204
    %1206 = vmatmul.f32.gmra.mxu0 %v1143
    %v1207 = vpop.f32.mrf.mxu0
    %v1208 = vadd.f32 0.0, %v1207
    %1209 = vmatmul.f32.gmra.mxu0 %v1146
    %v1210 = vpop.f32.mrf.mxu0
    %v1211 = vadd.f32 0.0, %v1210
    %1212 = vmatmul.f32.gmra.mxu0 %v1149
    %v1213 = vpop.f32.mrf.mxu0
    %v1214 = vadd.f32 0.0, %v1213
    %1215 = vmatmul.f32.gmra.mxu0 %v1152
    %v1216 = vpop.f32.mrf.mxu0
    %v1217 = vadd.f32 0.0, %v1216
    %1218 = vmatmul.f32.gmra.mxu0 %v1155
    %v1219 = vpop.f32.mrf.mxu0
    %v1220 = vadd.f32 0.0, %v1219
    %1221 = vmatmul.f32.gmra.mxu0 %v1158
    %v1222 = vpop.f32.mrf.mxu0
    %v1223 = vadd.f32 0.0, %v1222
    %1224 = vdwg.mxu0
    %v1225 = vld [vmem:[%s5] sm:$0x1]
    %v1226 = vld [vmem:[%s6] sm:$0x1]
    %v1227 = vsel %vm195, %v1178, 0.0
    %v1228 = vsel %vm195, %v1181, 0.0
    %v1229 = vadd.f32 %v1227, %v1228
    %v1230 = vsel %vm195, %v1184, 0.0
    %v1231 = vadd.f32 %v1229, %v1230
    %v1232 = vsel %vm195, %v1187, 0.0
    %v1233 = vadd.f32 %v1231, %v1232
    %v1234 = vsel %vm195, %v1190, 0.0
    %v1235 = vadd.f32 %v1233, %v1234
    %v1236 = vsel %vm195, %v1193, 0.0
    %v1237 = vadd.f32 %v1235, %v1236
    %v1238 = vsel %vm195, %v1196, 0.0
    %v1239 = vadd.f32 %v1237, %v1238
    %v1240 = vsel %vm195, %v1199, 0.0
    %v1241 = vadd.f32 %v1239, %v1240
    %v1242 = vsel %vm195, %v1202, 0.0
    %v1243 = vadd.f32 %v1241, %v1242
    %v1244 = vsel %vm195, %v1205, 0.0
    %v1245 = vadd.f32 %v1243, %v1244
    %v1246 = vsel %vm195, %v1208, 0.0
    %v1247 = vadd.f32 %v1245, %v1246
    %v1248 = vsel %vm195, %v1211, 0.0
    %v1249 = vadd.f32 %v1247, %v1248
    %v1250 = vsel %vm195, %v1214, 0.0
    %v1251 = vadd.f32 %v1249, %v1250
    %v1252 = vsel %vm195, %v1217, 0.0
    %v1253 = vadd.f32 %v1251, %v1252
    %v1254 = vsel %vm195, %v1220, 0.0
    %v1255 = vadd.f32 %v1253, %v1254
    %v1256 = vsel %vm195, %v1223, 0.0
    %v1257 = vadd.f32 %v1255, %v1256
    %v1258 = vrot.slane %v1257, 4
    %v1259 = vadd.f32 %v1257, %v1258
    %v1260 = vrot.slane %v1259, 2
    %v1261 = vadd.f32 %v1259, %v1260
    %v1262 = vrot.slane %v1261, 1
    %v1263 = vadd.f32 %v1261, %v1262
    %v1264 = vmul.f32 %v1263, %v239
    %v1265 = vsub.f32 %v1178, %v1264
    %v1266 = vsub.f32 %v1181, %v1264
    %v1267 = vsub.f32 %v1184, %v1264
    %v1268 = vsub.f32 %v1187, %v1264
    %v1269 = vsub.f32 %v1190, %v1264
    %v1270 = vsub.f32 %v1193, %v1264
    %v1271 = vsub.f32 %v1196, %v1264
    %v1272 = vsub.f32 %v1199, %v1264
    %v1273 = vsub.f32 %v1202, %v1264
    %v1274 = vsub.f32 %v1205, %v1264
    %v1275 = vsub.f32 %v1208, %v1264
    %v1276 = vsub.f32 %v1211, %v1264
    %v1277 = vsub.f32 %v1214, %v1264
    %v1278 = vsub.f32 %v1217, %v1264
    %v1279 = vsub.f32 %v1220, %v1264
    %v1280 = vsub.f32 %v1223, %v1264
    %v1281 = vmul.f32 %v1265, %v1265
    %v1282 = vmul.f32 %v1266, %v1266
    %v1283 = vmul.f32 %v1267, %v1267
    %v1284 = vmul.f32 %v1268, %v1268
    %v1285 = vmul.f32 %v1269, %v1269
    %v1286 = vmul.f32 %v1270, %v1270
    %v1287 = vmul.f32 %v1271, %v1271
    %v1288 = vmul.f32 %v1272, %v1272
    %v1289 = vmul.f32 %v1273, %v1273
    %v1290 = vmul.f32 %v1274, %v1274
    %v1291 = vmul.f32 %v1275, %v1275
    %v1292 = vmul.f32 %v1276, %v1276
    %v1293 = vmul.f32 %v1277, %v1277
    %v1294 = vmul.f32 %v1278, %v1278
    %v1295 = vmul.f32 %v1279, %v1279
    %v1296 = vmul.f32 %v1280, %v1280
    %v1297 = vsel %vm195, %v1281, 0.0
    %v1298 = vsel %vm195, %v1282, 0.0
    %v1299 = vadd.f32 %v1297, %v1298
    %v1300 = vsel %vm195, %v1283, 0.0
    %v1301 = vadd.f32 %v1299, %v1300
    %v1302 = vsel %vm195, %v1284, 0.0
    %v1303 = vadd.f32 %v1301, %v1302
    %v1304 = vsel %vm195, %v1285, 0.0
    %v1305 = vadd.f32 %v1303, %v1304
    %v1306 = vsel %vm195, %v1286, 0.0
    %v1307 = vadd.f32 %v1305, %v1306
    %v1308 = vsel %vm195, %v1287, 0.0
    %v1309 = vadd.f32 %v1307, %v1308
    %v1310 = vsel %vm195, %v1288, 0.0
    %v1311 = vadd.f32 %v1309, %v1310
    %v1312 = vsel %vm195, %v1289, 0.0
    %v1313 = vadd.f32 %v1311, %v1312
    %v1314 = vsel %vm195, %v1290, 0.0
    %v1315 = vadd.f32 %v1313, %v1314
    %v1316 = vsel %vm195, %v1291, 0.0
    %v1317 = vadd.f32 %v1315, %v1316
    %v1318 = vsel %vm195, %v1292, 0.0
    %v1319 = vadd.f32 %v1317, %v1318
    %v1320 = vsel %vm195, %v1293, 0.0
    %v1321 = vadd.f32 %v1319, %v1320
    %v1322 = vsel %vm195, %v1294, 0.0
    %v1323 = vadd.f32 %v1321, %v1322
    %v1324 = vsel %vm195, %v1295, 0.0
    %v1325 = vadd.f32 %v1323, %v1324
    %v1326 = vsel %vm195, %v1296, 0.0
    %v1327 = vadd.f32 %v1325, %v1326
    %v1328 = vrot.slane %v1327, 4
    %v1329 = vadd.f32 %v1327, %v1328
    %v1330 = vrot.slane %v1329, 2
    %v1331 = vadd.f32 %v1329, %v1330
    %v1332 = vrot.slane %v1331, 1
    %v1333 = vadd.f32 %v1331, %v1332
    %v1334 = vmul.f32 %v1333, %v239
    %v1335 = vadd.f32 %v1334, 1e-05
    %v1336 = vrsqrt.pop %v1335
    %v1337 = vmul.f32 %v1336, %v1335
    %v1338 = vmul.f32 %v1337, %v1336
    %v1339 = vmul.f32 0.5, %v1338
    %v1340 = vsub.f32 1.5, %v1339
    %v1341 = vmul.f32 %v1336, %v1340
    %vm1342 = vweird.f32 %v1335
    %vm1343 = vweird.f32 %v1336
    %vm1344 = vmor %vm1342, %vm1343
    %v1345 = vsel %vm1344, %v1336, %v1341
    %v1346 = vmul.f32 %v1225, %v1345
    %v1348 = vperm.slane %v1346, 0
    %v1350 = vmul.f32 %v1265, %v1348
    %v1351 = vmul.f32 %v1266, %v1348
    %v1352 = vmul.f32 %v1267, %v1348
    %v1353 = vmul.f32 %v1268, %v1348
    %v1354 = vmul.f32 %v1269, %v1348
    %v1355 = vmul.f32 %v1270, %v1348
    %v1356 = vmul.f32 %v1271, %v1348
    %v1357 = vmul.f32 %v1272, %v1348
    %v1358 = vmul.f32 %v1273, %v1348
    %v1359 = vmul.f32 %v1274, %v1348
    %v1360 = vmul.f32 %v1275, %v1348
    %v1361 = vmul.f32 %v1276, %v1348
    %v1362 = vmul.f32 %v1277, %v1348
    %v1363 = vmul.f32 %v1278, %v1348
    %v1364 = vmul.f32 %v1279, %v1348
    %v1365 = vmul.f32 %v1280, %v1348
    %v1367 = vperm.slane %v1226, 0
    %v1369 = vadd.f32 %v1350, %v1367
    %v1370 = vadd.f32 %v1351, %v1367
    %v1371 = vadd.f32 %v1352, %v1367
    %v1372 = vadd.f32 %v1353, %v1367
    %v1373 = vadd.f32 %v1354, %v1367
    %v1374 = vadd.f32 %v1355, %v1367
    %v1375 = vadd.f32 %v1356, %v1367
    %v1376 = vadd.f32 %v1357, %v1367
    %v1377 = vadd.f32 %v1358, %v1367
    %v1378 = vadd.f32 %v1359, %v1367
    %v1379 = vadd.f32 %v1360, %v1367
    %v1380 = vadd.f32 %v1361, %v1367
    %v1381 = vadd.f32 %v1362, %v1367
    %v1382 = vadd.f32 %v1363, %v1367
    %v1383 = vadd.f32 %v1364, %v1367
    %v1384 = vadd.f32 %v1365, %v1367
    %v1385 = vmax.f32 %v1369, 0.0
    %v1386 = vmax.f32 %v1370, 0.0
    %v1387 = vmax.f32 %v1371, 0.0
    %v1388 = vmax.f32 %v1372, 0.0
    %v1389 = vmax.f32 %v1373, 0.0
    %v1390 = vmax.f32 %v1374, 0.0
    %v1391 = vmax.f32 %v1375, 0.0
    %v1392 = vmax.f32 %v1376, 0.0
    %v1393 = vmax.f32 %v1377, 0.0
    %v1394 = vmax.f32 %v1378, 0.0
    %v1395 = vmax.f32 %v1379, 0.0
    %v1396 = vmax.f32 %v1380, 0.0
    %v1397 = vmax.f32 %v1381, 0.0
    %v1398 = vmax.f32 %v1382, 0.0
    %v1399 = vmax.f32 %v1383, 0.0
    %v1400 = vmax.f32 %v1384, 0.0
    %v1401 = vld [vmem:[%s7] sm:$0xff]
    %v1403 = vsel %vm195, %v1385, 0
    %v1406 = vsel %vm195, %v1386, 0
    %v1409 = vsel %vm195, %v1387, 0
    %v1412 = vsel %vm195, %v1388, 0
    %v1415 = vsel %vm195, %v1389, 0
    %v1418 = vsel %vm195, %v1390, 0
    %v1421 = vsel %vm195, %v1391, 0
    %v1424 = vsel %vm195, %v1392, 0
    %v1427 = vsel %vm195, %v1393, 0
    %v1430 = vsel %vm195, %v1394, 0
    %v1433 = vsel %vm195, %v1395, 0
    %v1436 = vsel %vm195, %v1396, 0
    %v1439 = vsel %vm195, %v1397, 0
    %v1442 = vsel %vm195, %v1398, 0
    %v1445 = vsel %vm195, %v1399, 0
    %v1448 = vsel %vm195, %v1400, 0
    %1450 = vmatpush.msra.mxu0 0.0
    %1451 = vmatpush.msra.mxu0 0.0
    %1452 = vmatpush.msra.mxu0 0.0
    %1453 = vmatpush.msra.mxu0 0.0
    %1454 = vmatpush.msra.mxu0 0.0
    %1455 = vmatpush.msra.mxu0 0.0
    %1456 = vmatpush.msra.mxu0 0.0
    %1457 = vmatpush.msra.mxu0 0.0
    %1458 = vmatpush.msra.mxu0 0.0
    %1459 = vmatpush.msra.mxu0 0.0
    %1460 = vmatpush.msra.mxu0 0.0
    %1461 = vmatpush.msra.mxu0 0.0
    %1462 = vmatpush.msra.mxu0 0.0
    %1463 = vmatpush.msra.mxu0 0.0
    %1464 = vmatpush.msra.mxu0 0.0
    %1465 = vmatpush.msra.mxu0 %v1401
    %1466 = vmatmul.f32.gmra.mxu0 %v1403
    %v1467 = vpop.f32.mrf.mxu0
    %v1468 = vadd.f32 0.0, %v1467
    %1469 = vmatmul.f32.gmra.mxu0 %v1406
    %v1470 = vpop.f32.mrf.mxu0
    %v1471 = vadd.f32 0.0, %v1470
    %1472 = vmatmul.f32.gmra.mxu0 %v1409
    %v1473 = vpop.f32.mrf.mxu0
    %v1474 = vadd.f32 0.0, %v1473
    %1475 = vmatmul.f32.gmra.mxu0 %v1412
    %v1476 = vpop.f32.mrf.mxu0
    %v1477 = vadd.f32 0.0, %v1476
    %1478 = vmatmul.f32.gmra.mxu0 %v1415
    %v1479 = vpop.f32.mrf.mxu0
    %v1480 = vadd.f32 0.0, %v1479
    %1481 = vmatmul.f32.gmra.mxu0 %v1418
    %v1482 = vpop.f32.mrf.mxu0
    %v1483 = vadd.f32 0.0, %v1482
    %1484 = vmatmul.f32.gmra.mxu0 %v1421
    %v1485 = vpop.f32.mrf.mxu0
    %v1486 = vadd.f32 0.0, %v1485
    %1487 = vmatmul.f32.gmra.mxu0 %v1424
    %v1488 = vpop.f32.mrf.mxu0
    %v1489 = vadd.f32 0.0, %v1488
    %1490 = vmatmul.f32.gmra.mxu0 %v1427
    %v1491 = vpop.f32.mrf.mxu0
    %v1492 = vadd.f32 0.0, %v1491
    %1493 = vmatmul.f32.gmra.mxu0 %v1430
    %v1494 = vpop.f32.mrf.mxu0
    %v1495 = vadd.f32 0.0, %v1494
    %1496 = vmatmul.f32.gmra.mxu0 %v1433
    %v1497 = vpop.f32.mrf.mxu0
    %v1498 = vadd.f32 0.0, %v1497
    %1499 = vmatmul.f32.gmra.mxu0 %v1436
    %v1500 = vpop.f32.mrf.mxu0
    %v1501 = vadd.f32 0.0, %v1500
    %1502 = vmatmul.f32.gmra.mxu0 %v1439
    %v1503 = vpop.f32.mrf.mxu0
    %v1504 = vadd.f32 0.0, %v1503
    %1505 = vmatmul.f32.gmra.mxu0 %v1442
    %v1506 = vpop.f32.mrf.mxu0
    %v1507 = vadd.f32 0.0, %v1506
    %1508 = vmatmul.f32.gmra.mxu0 %v1445
    %v1509 = vpop.f32.mrf.mxu0
    %v1510 = vadd.f32 0.0, %v1509
    %1511 = vmatmul.f32.gmra.mxu0 %v1448
    %v1512 = vpop.f32.mrf.mxu0
    %v1513 = vadd.f32 0.0, %v1512
    %1514 = vdwg.mxu0
    %v1515 = vld [vmem:[%s8] sm:$0x1]
    %v1516 = vld [vmem:[%s9] sm:$0x1]
    %v1517 = vsel %vm1017, %v1468, 0.0
    %v1518 = vsel %vm1017, %v1471, 0.0
    %v1519 = vadd.f32 %v1517, %v1518
    %v1520 = vsel %vm1017, %v1474, 0.0
    %v1521 = vadd.f32 %v1519, %v1520
    %v1522 = vsel %vm1017, %v1477, 0.0
    %v1523 = vadd.f32 %v1521, %v1522
    %v1524 = vsel %vm1017, %v1480, 0.0
    %v1525 = vadd.f32 %v1523, %v1524
    %v1526 = vsel %vm1017, %v1483, 0.0
    %v1527 = vadd.f32 %v1525, %v1526
    %v1528 = vsel %vm1017, %v1486, 0.0
    %v1529 = vadd.f32 %v1527, %v1528
    %v1530 = vsel %vm1017, %v1489, 0.0
    %v1531 = vadd.f32 %v1529, %v1530
    %v1532 = vsel %vm1017, %v1492, 0.0
    %v1533 = vadd.f32 %v1531, %v1532
    %v1534 = vsel %vm1017, %v1495, 0.0
    %v1535 = vadd.f32 %v1533, %v1534
    %v1536 = vsel %vm1017, %v1498, 0.0
    %v1537 = vadd.f32 %v1535, %v1536
    %v1538 = vsel %vm1017, %v1501, 0.0
    %v1539 = vadd.f32 %v1537, %v1538
    %v1540 = vsel %vm1017, %v1504, 0.0
    %v1541 = vadd.f32 %v1539, %v1540
    %v1542 = vsel %vm1017, %v1507, 0.0
    %v1543 = vadd.f32 %v1541, %v1542
    %v1544 = vsel %vm1017, %v1510, 0.0
    %v1545 = vadd.f32 %v1543, %v1544
    %v1546 = vsel %vm1017, %v1513, 0.0
    %v1547 = vadd.f32 %v1545, %v1546
    %v1548 = vrot.slane %v1547, 4
    %v1549 = vadd.f32 %v1547, %v1548
    %v1550 = vrot.slane %v1549, 2
    %v1551 = vadd.f32 %v1549, %v1550
    %v1552 = vrot.slane %v1551, 1
    %v1553 = vadd.f32 %v1551, %v1552
    %v1554 = vmul.f32 %v1553, %v239
    %v1555 = vsub.f32 %v1468, %v1554
    %v1556 = vsub.f32 %v1471, %v1554
    %v1557 = vsub.f32 %v1474, %v1554
    %v1558 = vsub.f32 %v1477, %v1554
    %v1559 = vsub.f32 %v1480, %v1554
    %v1560 = vsub.f32 %v1483, %v1554
    %v1561 = vsub.f32 %v1486, %v1554
    %v1562 = vsub.f32 %v1489, %v1554
    %v1563 = vsub.f32 %v1492, %v1554
    %v1564 = vsub.f32 %v1495, %v1554
    %v1565 = vsub.f32 %v1498, %v1554
    %v1566 = vsub.f32 %v1501, %v1554
    %v1567 = vsub.f32 %v1504, %v1554
    %v1568 = vsub.f32 %v1507, %v1554
    %v1569 = vsub.f32 %v1510, %v1554
    %v1570 = vsub.f32 %v1513, %v1554
    %v1571 = vmul.f32 %v1555, %v1555
    %v1572 = vmul.f32 %v1556, %v1556
    %v1573 = vmul.f32 %v1557, %v1557
    %v1574 = vmul.f32 %v1558, %v1558
    %v1575 = vmul.f32 %v1559, %v1559
    %v1576 = vmul.f32 %v1560, %v1560
    %v1577 = vmul.f32 %v1561, %v1561
    %v1578 = vmul.f32 %v1562, %v1562
    %v1579 = vmul.f32 %v1563, %v1563
    %v1580 = vmul.f32 %v1564, %v1564
    %v1581 = vmul.f32 %v1565, %v1565
    %v1582 = vmul.f32 %v1566, %v1566
    %v1583 = vmul.f32 %v1567, %v1567
    %v1584 = vmul.f32 %v1568, %v1568
    %v1585 = vmul.f32 %v1569, %v1569
    %v1586 = vmul.f32 %v1570, %v1570
    %v1587 = vsel %vm1017, %v1571, 0.0
    %v1588 = vsel %vm1017, %v1572, 0.0
    %v1589 = vadd.f32 %v1587, %v1588
    %v1590 = vsel %vm1017, %v1573, 0.0
    %v1591 = vadd.f32 %v1589, %v1590
    %v1592 = vsel %vm1017, %v1574, 0.0
    %v1593 = vadd.f32 %v1591, %v1592
    %v1594 = vsel %vm1017, %v1575, 0.0
    %v1595 = vadd.f32 %v1593, %v1594
    %v1596 = vsel %vm1017, %v1576, 0.0
    %v1597 = vadd.f32 %v1595, %v1596
    %v1598 = vsel %vm1017, %v1577, 0.0
    %v1599 = vadd.f32 %v1597, %v1598
    %v1600 = vsel %vm1017, %v1578, 0.0
    %v1601 = vadd.f32 %v1599, %v1600
    %v1602 = vsel %vm1017, %v1579, 0.0
    %v1603 = vadd.f32 %v1601, %v1602
    %v1604 = vsel %vm1017, %v1580, 0.0
    %v1605 = vadd.f32 %v1603, %v1604
    %v1606 = vsel %vm1017, %v1581, 0.0
    %v1607 = vadd.f32 %v1605, %v1606
    %v1608 = vsel %vm1017, %v1582, 0.0
    %v1609 = vadd.f32 %v1607, %v1608
    %v1610 = vsel %vm1017, %v1583, 0.0
    %v1611 = vadd.f32 %v1609, %v1610
    %v1612 = vsel %vm1017, %v1584, 0.0
    %v1613 = vadd.f32 %v1611, %v1612
    %v1614 = vsel %vm1017, %v1585, 0.0
    %v1615 = vadd.f32 %v1613, %v1614
    %v1616 = vsel %vm1017, %v1586, 0.0
    %v1617 = vadd.f32 %v1615, %v1616
    %v1618 = vrot.slane %v1617, 4
    %v1619 = vadd.f32 %v1617, %v1618
    %v1620 = vrot.slane %v1619, 2
    %v1621 = vadd.f32 %v1619, %v1620
    %v1622 = vrot.slane %v1621, 1
    %v1623 = vadd.f32 %v1621, %v1622
    %v1624 = vmul.f32 %v1623, %v239
    %v1625 = vadd.f32 %v1624, 1e-05
    %v1626 = vrsqrt.pop %v1625
    %v1627 = vmul.f32 %v1626, %v1625
    %v1628 = vmul.f32 %v1627, %v1626
    %v1629 = vmul.f32 0.5, %v1628
    %v1630 = vsub.f32 1.5, %v1629
    %v1631 = vmul.f32 %v1626, %v1630
    %vm1632 = vweird.f32 %v1625
    %vm1633 = vweird.f32 %v1626
    %vm1634 = vmor %vm1632, %vm1633
    %v1635 = vsel %vm1634, %v1626, %v1631
    %v1636 = vmul.f32 %v1515, %v1635
    %v1638 = vperm.slane %v1636, 0
    %v1640 = vmul.f32 %v1555, %v1638
    %v1641 = vmul.f32 %v1556, %v1638
    %v1642 = vmul.f32 %v1557, %v1638
    %v1643 = vmul.f32 %v1558, %v1638
    %v1644 = vmul.f32 %v1559, %v1638
    %v1645 = vmul.f32 %v1560, %v1638
    %v1646 = vmul.f32 %v1561, %v1638
    %v1647 = vmul.f32 %v1562, %v1638
    %v1648 = vmul.f32 %v1563, %v1638
    %v1649 = vmul.f32 %v1564, %v1638
    %v1650 = vmul.f32 %v1565, %v1638
    %v1651 = vmul.f32 %v1566, %v1638
    %v1652 = vmul.f32 %v1567, %v1638
    %v1653 = vmul.f32 %v1568, %v1638
    %v1654 = vmul.f32 %v1569, %v1638
    %v1655 = vmul.f32 %v1570, %v1638
    %v1657 = vperm.slane %v1516, 0
    %v1659 = vadd.f32 %v1640, %v1657
    %v1660 = vadd.f32 %v1641, %v1657
    %v1661 = vadd.f32 %v1642, %v1657
    %v1662 = vadd.f32 %v1643, %v1657
    %v1663 = vadd.f32 %v1644, %v1657
    %v1664 = vadd.f32 %v1645, %v1657
    %v1665 = vadd.f32 %v1646, %v1657
    %v1666 = vadd.f32 %v1647, %v1657
    %v1667 = vadd.f32 %v1648, %v1657
    %v1668 = vadd.f32 %v1649, %v1657
    %v1669 = vadd.f32 %v1650, %v1657
    %v1670 = vadd.f32 %v1651, %v1657
    %v1671 = vadd.f32 %v1652, %v1657
    %v1672 = vadd.f32 %v1653, %v1657
    %v1673 = vadd.f32 %v1654, %v1657
    %v1674 = vadd.f32 %v1655, %v1657
    %v1675 = vld [vmem:[%s10] sm:$0xff]
    %v1676 = vld [vmem:[%s10 + $0x8] sm:$0xff]
    %1677 = vmatpush.msra.mxu0 0.0
    %1678 = vmatpush.msra.mxu0 0.0
    %1679 = vmatpush.msra.mxu0 0.0
    %1680 = vmatpush.msra.mxu0 0.0
    %1681 = vmatpush.msra.mxu0 0.0
    %1682 = vmatpush.msra.mxu0 0.0
    %1683 = vmatpush.msra.mxu0 0.0
    %1684 = vmatpush.msra.mxu0 0.0
    %1685 = vmatpush.msra.mxu0 0.0
    %1686 = vmatpush.msra.mxu0 0.0
    %1687 = vmatpush.msra.mxu0 0.0
    %1688 = vmatpush.msra.mxu0 0.0
    %1689 = vmatpush.msra.mxu0 0.0
    %1690 = vmatpush.msra.mxu0 0.0
    %1691 = vmatpush.msra.mxu0 %v1676
    %1692 = vmatpush.msra.mxu0 %v1675
    %1693 = vmatmul.f32.gmra.mxu0 %v81
    %v1694 = vpop.f32.mrf.mxu0
    %v1695 = vadd.f32 0.0, %v1694
    %1696 = vmatmul.f32.gmra.mxu0 %v84
    %v1697 = vpop.f32.mrf.mxu0
    %v1698 = vadd.f32 0.0, %v1697
    %1699 = vmatmul.f32.gmra.mxu0 %v87
    %v1700 = vpop.f32.mrf.mxu0
    %v1701 = vadd.f32 0.0, %v1700
    %1702 = vmatmul.f32.gmra.mxu0 %v90
    %v1703 = vpop.f32.mrf.mxu0
    %v1704 = vadd.f32 0.0, %v1703
    %1705 = vmatmul.f32.gmra.mxu0 %v93
    %v1706 = vpop.f32.mrf.mxu0
    %v1707 = vadd.f32 0.0, %v1706
    %1708 = vmatmul.f32.gmra.mxu0 %v96
    %v1709 = vpop.f32.mrf.mxu0
    %v1710 = vadd.f32 0.0, %v1709
    %1711 = vmatmul.f32.gmra.mxu0 %v99
    %v1712 = vpop.f32.mrf.mxu0
    %v1713 = vadd.f32 0.0, %v1712
    %1714 = vmatmul.f32.gmra.mxu0 %v102
    %v1715 = vpop.f32.mrf.mxu0
    %v1716 = vadd.f32 0.0, %v1715
    %1717 = vmatmul.f32.gmra.mxu0 %v105
    %v1718 = vpop.f32.mrf.mxu0
    %v1719 = vadd.f32 0.0, %v1718
    %1720 = vmatmul.f32.gmra.mxu0 %v108
    %v1721 = vpop.f32.mrf.mxu0
    %v1722 = vadd.f32 0.0, %v1721
    %1723 = vmatmul.f32.gmra.mxu0 %v111
    %v1724 = vpop.f32.mrf.mxu0
    %v1725 = vadd.f32 0.0, %v1724
    %1726 = vmatmul.f32.gmra.mxu0 %v114
    %v1727 = vpop.f32.mrf.mxu0
    %v1728 = vadd.f32 0.0, %v1727
    %1729 = vmatmul.f32.gmra.mxu0 %v117
    %v1730 = vpop.f32.mrf.mxu0
    %v1731 = vadd.f32 0.0, %v1730
    %1732 = vmatmul.f32.gmra.mxu0 %v120
    %v1733 = vpop.f32.mrf.mxu0
    %v1734 = vadd.f32 0.0, %v1733
    %1735 = vmatmul.f32.gmra.mxu0 %v123
    %v1736 = vpop.f32.mrf.mxu0
    %v1737 = vadd.f32 0.0, %v1736
    %1738 = vmatmul.f32.gmra.mxu0 %v126
    %v1739 = vpop.f32.mrf.mxu0
    %v1740 = vadd.f32 0.0, %v1739
    %1741 = vdwg.mxu0
    %v1742 = vld [vmem:[%s11] sm:$0x1]
    %v1743 = vld [vmem:[%s12] sm:$0x1]
    %v1744 = vsel %vm1017, %v1695, 0.0
    %v1745 = vsel %vm1017, %v1698, 0.0
    %v1746 = vadd.f32 %v1744, %v1745
    %v1747 = vsel %vm1017, %v1701, 0.0
    %v1748 = vadd.f32 %v1746, %v1747
    %v1749 = vsel %vm1017, %v1704, 0.0
    %v1750 = vadd.f32 %v1748, %v1749
    %v1751 = vsel %vm1017, %v1707, 0.0
    %v1752 = vadd.f32 %v1750, %v1751
    %v1753 = vsel %vm1017, %v1710, 0.0
    %v1754 = vadd.f32 %v1752, %v1753
    %v1755 = vsel %vm1017, %v1713, 0.0
    %v1756 = vadd.f32 %v1754, %v1755
    %v1757 = vsel %vm1017, %v1716, 0.0
    %v1758 = vadd.f32 %v1756, %v1757
    %v1759 = vsel %vm1017, %v1719, 0.0
    %v1760 = vadd.f32 %v1758, %v1759
    %v1761 = vsel %vm1017, %v1722, 0.0
    %v1762 = vadd.f32 %v1760, %v1761
    %v1763 = vsel %vm1017, %v1725, 0.0
    %v1764 = vadd.f32 %v1762, %v1763
    %v1765 = vsel %vm1017, %v1728, 0.0
    %v1766 = vadd.f32 %v1764, %v1765
    %v1767 = vsel %vm1017, %v1731, 0.0
    %v1768 = vadd.f32 %v1766, %v1767
    %v1769 = vsel %vm1017, %v1734, 0.0
    %v1770 = vadd.f32 %v1768, %v1769
    %v1771 = vsel %vm1017, %v1737, 0.0
    %v1772 = vadd.f32 %v1770, %v1771
    %v1773 = vsel %vm1017, %v1740, 0.0
    %v1774 = vadd.f32 %v1772, %v1773
    %v1775 = vrot.slane %v1774, 4
    %v1776 = vadd.f32 %v1774, %v1775
    %v1777 = vrot.slane %v1776, 2
    %v1778 = vadd.f32 %v1776, %v1777
    %v1779 = vrot.slane %v1778, 1
    %v1780 = vadd.f32 %v1778, %v1779
    %v1781 = vmul.f32 %v1780, %v239
    %v1782 = vsub.f32 %v1695, %v1781
    %v1783 = vsub.f32 %v1698, %v1781
    %v1784 = vsub.f32 %v1701, %v1781
    %v1785 = vsub.f32 %v1704, %v1781
    %v1786 = vsub.f32 %v1707, %v1781
    %v1787 = vsub.f32 %v1710, %v1781
    %v1788 = vsub.f32 %v1713, %v1781
    %v1789 = vsub.f32 %v1716, %v1781
    %v1790 = vsub.f32 %v1719, %v1781
    %v1791 = vsub.f32 %v1722, %v1781
    %v1792 = vsub.f32 %v1725, %v1781
    %v1793 = vsub.f32 %v1728, %v1781
    %v1794 = vsub.f32 %v1731, %v1781
    %v1795 = vsub.f32 %v1734, %v1781
    %v1796 = vsub.f32 %v1737, %v1781
    %v1797 = vsub.f32 %v1740, %v1781
    %v1798 = vmul.f32 %v1782, %v1782
    %v1799 = vmul.f32 %v1783, %v1783
    %v1800 = vmul.f32 %v1784, %v1784
    %v1801 = vmul.f32 %v1785, %v1785
    %v1802 = vmul.f32 %v1786, %v1786
    %v1803 = vmul.f32 %v1787, %v1787
    %v1804 = vmul.f32 %v1788, %v1788
    %v1805 = vmul.f32 %v1789, %v1789
    %v1806 = vmul.f32 %v1790, %v1790
    %v1807 = vmul.f32 %v1791, %v1791
    %v1808 = vmul.f32 %v1792, %v1792
    %v1809 = vmul.f32 %v1793, %v1793
    %v1810 = vmul.f32 %v1794, %v1794
    %v1811 = vmul.f32 %v1795, %v1795
    %v1812 = vmul.f32 %v1796, %v1796
    %v1813 = vmul.f32 %v1797, %v1797
    %v1814 = vsel %vm1017, %v1798, 0.0
    %v1815 = vsel %vm1017, %v1799, 0.0
    %v1816 = vadd.f32 %v1814, %v1815
    %v1817 = vsel %vm1017, %v1800, 0.0
    %v1818 = vadd.f32 %v1816, %v1817
    %v1819 = vsel %vm1017, %v1801, 0.0
    %v1820 = vadd.f32 %v1818, %v1819
    %v1821 = vsel %vm1017, %v1802, 0.0
    %v1822 = vadd.f32 %v1820, %v1821
    %v1823 = vsel %vm1017, %v1803, 0.0
    %v1824 = vadd.f32 %v1822, %v1823
    %v1825 = vsel %vm1017, %v1804, 0.0
    %v1826 = vadd.f32 %v1824, %v1825
    %v1827 = vsel %vm1017, %v1805, 0.0
    %v1828 = vadd.f32 %v1826, %v1827
    %v1829 = vsel %vm1017, %v1806, 0.0
    %v1830 = vadd.f32 %v1828, %v1829
    %v1831 = vsel %vm1017, %v1807, 0.0
    %v1832 = vadd.f32 %v1830, %v1831
    %v1833 = vsel %vm1017, %v1808, 0.0
    %v1834 = vadd.f32 %v1832, %v1833
    %v1835 = vsel %vm1017, %v1809, 0.0
    %v1836 = vadd.f32 %v1834, %v1835
    %v1837 = vsel %vm1017, %v1810, 0.0
    %v1838 = vadd.f32 %v1836, %v1837
    %v1839 = vsel %vm1017, %v1811, 0.0
    %v1840 = vadd.f32 %v1838, %v1839
    %v1841 = vsel %vm1017, %v1812, 0.0
    %v1842 = vadd.f32 %v1840, %v1841
    %v1843 = vsel %vm1017, %v1813, 0.0
    %v1844 = vadd.f32 %v1842, %v1843
    %v1845 = vrot.slane %v1844, 4
    %v1846 = vadd.f32 %v1844, %v1845
    %v1847 = vrot.slane %v1846, 2
    %v1848 = vadd.f32 %v1846, %v1847
    %v1849 = vrot.slane %v1848, 1
    %v1850 = vadd.f32 %v1848, %v1849
    %v1851 = vmul.f32 %v1850, %v239
    %v1852 = vadd.f32 %v1851, 1e-05
    %v1853 = vrsqrt.pop %v1852
    %v1854 = vmul.f32 %v1853, %v1852
    %v1855 = vmul.f32 %v1854, %v1853
    %v1856 = vmul.f32 0.5, %v1855
    %v1857 = vsub.f32 1.5, %v1856
    %v1858 = vmul.f32 %v1853, %v1857
    %vm1859 = vweird.f32 %v1852
    %vm1860 = vweird.f32 %v1853
    %vm1861 = vmor %vm1859, %vm1860
    %v1862 = vsel %vm1861, %v1853, %v1858
    %v1863 = vmul.f32 %v1742, %v1862
    %v1865 = vperm.slane %v1863, 0
    %v1867 = vmul.f32 %v1782, %v1865
    %v1868 = vmul.f32 %v1783, %v1865
    %v1869 = vmul.f32 %v1784, %v1865
    %v1870 = vmul.f32 %v1785, %v1865
    %v1871 = vmul.f32 %v1786, %v1865
    %v1872 = vmul.f32 %v1787, %v1865
    %v1873 = vmul.f32 %v1788, %v1865
    %v1874 = vmul.f32 %v1789, %v1865
    %v1875 = vmul.f32 %v1790, %v1865
    %v1876 = vmul.f32 %v1791, %v1865
    %v1877 = vmul.f32 %v1792, %v1865
    %v1878 = vmul.f32 %v1793, %v1865
    %v1879 = vmul.f32 %v1794, %v1865
    %v1880 = vmul.f32 %v1795, %v1865
    %v1881 = vmul.f32 %v1796, %v1865
    %v1882 = vmul.f32 %v1797, %v1865
    %v1884 = vperm.slane %v1743, 0
    %v1886 = vadd.f32 %v1867, %v1884
    %v1887 = vadd.f32 %v1868, %v1884
    %v1888 = vadd.f32 %v1869, %v1884
    %v1889 = vadd.f32 %v1870, %v1884
    %v1890 = vadd.f32 %v1871, %v1884
    %v1891 = vadd.f32 %v1872, %v1884
    %v1892 = vadd.f32 %v1873, %v1884
    %v1893 = vadd.f32 %v1874, %v1884
    %v1894 = vadd.f32 %v1875, %v1884
    %v1895 = vadd.f32 %v1876, %v1884
    %v1896 = vadd.f32 %v1877, %v1884
    %v1897 = vadd.f32 %v1878, %v1884
    %v1898 = vadd.f32 %v1879, %v1884
    %v1899 = vadd.f32 %v1880, %v1884
    %v1900 = vadd.f32 %v1881, %v1884
    %v1901 = vadd.f32 %v1882, %v1884
    %v1902 = vadd.f32 %v1659, %v1886
    %v1903 = vadd.f32 %v1660, %v1887
    %v1904 = vadd.f32 %v1661, %v1888
    %v1905 = vadd.f32 %v1662, %v1889
    %v1906 = vadd.f32 %v1663, %v1890
    %v1907 = vadd.f32 %v1664, %v1891
    %v1908 = vadd.f32 %v1665, %v1892
    %v1909 = vadd.f32 %v1666, %v1893
    %v1910 = vadd.f32 %v1667, %v1894
    %v1911 = vadd.f32 %v1668, %v1895
    %v1912 = vadd.f32 %v1669, %v1896
    %v1913 = vadd.f32 %v1670, %v1897
    %v1914 = vadd.f32 %v1671, %v1898
    %v1915 = vadd.f32 %v1672, %v1899
    %v1916 = vadd.f32 %v1673, %v1900
    %v1917 = vadd.f32 %v1674, %v1901
    %v1918 = vmax.f32 %v1902, 0.0
    %v1919 = vmax.f32 %v1903, 0.0
    %v1920 = vmax.f32 %v1904, 0.0
    %v1921 = vmax.f32 %v1905, 0.0
    %v1922 = vmax.f32 %v1906, 0.0
    %v1923 = vmax.f32 %v1907, 0.0
    %v1924 = vmax.f32 %v1908, 0.0
    %v1925 = vmax.f32 %v1909, 0.0
    %v1926 = vmax.f32 %v1910, 0.0
    %v1927 = vmax.f32 %v1911, 0.0
    %v1928 = vmax.f32 %v1912, 0.0
    %v1929 = vmax.f32 %v1913, 0.0
    %v1930 = vmax.f32 %v1914, 0.0
    %v1931 = vmax.f32 %v1915, 0.0
    %v1932 = vmax.f32 %v1916, 0.0
    %v1933 = vmax.f32 %v1917, 0.0
    %1934 = vxpose.xlu0.b32.start [1/16] %v1918, 128
    %1935 = vxpose.xlu0.b32.cont [2/16] %v1919, 128
    %1936 = vxpose.xlu0.b32.cont [3/16] %v1920, 128
    %1937 = vxpose.xlu0.b32.cont [4/16] %v1921, 128
    %1938 = vxpose.xlu0.b32.cont [5/16] %v1922, 128
    %1939 = vxpose.xlu0.b32.cont [6/16] %v1923, 128
    %1940 = vxpose.xlu0.b32.cont [7/16] %v1924, 128
    %1941 = vxpose.xlu0.b32.cont [8/16] %v1925, 128
    %1942 = vxpose.xlu0.b32.cont [9/16] %v1926, 128
    %1943 = vxpose.xlu0.b32.cont [10/16] %v1927, 128
    %1944 = vxpose.xlu0.b32.cont [11/16] %v1928, 128
    %1945 = vxpose.xlu0.b32.cont [12/16] %v1929, 128
    %1946 = vxpose.xlu0.b32.cont [13/16] %v1930, 128
    %1947 = vxpose.xlu0.b32.cont [14/16] %v1931, 128
    %1948 = vxpose.xlu0.b32.cont [15/16] %v1932, 128
    %1949 = vxpose.xlu0.b32.end [16/16] %v1933, 128
    %v1950 = vpop.trf.xlu0
    %v1951 = vpop.trf.xlu0
    %v1952 = vpop.trf.xlu0
    %v1953 = vpop.trf.xlu0
    %v1954 = vpop.trf.xlu0
    %v1955 = vpop.trf.xlu0
    %v1956 = vpop.trf.xlu0
    %v1957 = vpop.trf.xlu0
    %v1958 = vpop.trf.xlu0
    %v1959 = vpop.trf.xlu0
    %v1960 = vpop.trf.xlu0
    %v1961 = vpop.trf.xlu0
    %v1962 = vpop.trf.xlu0
    %v1963 = vpop.trf.xlu0
    %v1964 = vpop.trf.xlu0
    %v1965 = vpop.trf.xlu0
    %1966 = vst [vmem:[#allocation5] sm:$0xff] %v1950
    %1967 = vst [vmem:[#allocation5 + $0x8] sm:$0xff] %v1951
    %1968 = vst [vmem:[#allocation5 + $0x10] sm:$0xff] %v1952
    %1969 = vst [vmem:[#allocation5 + $0x18] sm:$0xff] %v1953
    // Predicated region
    $region58: #{tpu_custom_call.1} parent=1 // pred_check
      _
    $region59: #{tpu_custom_call.1} parent=1 // pred_check_branch
      %1971 = sbr.rel (0) target = $region61
    $region60: #{tpu_custom_call.1} parent=1 // pred_region
      %1973 = vsyncadd [#allocation4], 0
      %s1974 = sshll.u32 [#allocation5], 4
      %s1975 = int_to_ptr.vmem [resolvable:$true] %s1974
      %s1976 = sshll.u32 %s13, 4
      %s1977 = int_to_ptr.hbm [resolvable:$true] %s1976
      %1982 = dma.vmem_to_hbm [thread:$0]  %s1975, 512, %s1977, [#allocation4], 128, 128, 8
    $region61: #{tpu_custom_call.1} parent=1 // pred_fallthru
      _
    // Predicated region
    $region62: #{tpu_custom_call.1} parent=1 // pred_check
      _
    $region63: #{tpu_custom_call.1} parent=1 // pred_check_branch
      %1984 = sbr.rel (0) target = $region65
    $region64: #{tpu_custom_call.1} parent=1 // pred_region
      %1986 = dma.done [#allocation4], 512
    $region65: #{tpu_custom_call.1} parent=1 // pred_fallthru
      _
    %1987 = vsyncpa [#allocation3], 1
    %1988 = vsyncpa [#allocation4], 1

</llo_original>
